<compile_context>
chip_gen: v7x
topology: tpu7x:2x2x1
jax: 0.10.0
libtpu: 0.0.40
codegen_flags: <defaults>
</compile_context>

<pallas_src>
import functools
import math

import jax
import jax.numpy as jnp
import numpy as np
from jax.experimental import pallas as pl
from jax.experimental.pallas import tpu as pltpu


# ----------------------------------------------------------------------------
# Fused Pallas kernel: grid axis = layer; activations resident in VMEM scratch.
# ----------------------------------------------------------------------------
def _fused_transformer_kernel(x_ref, inw_ref, inb_ref, outw_ref, outb_ref,
                              g_ref, b_ref, decw_ref, decb_ref,
                              o_ref, act_ref, *, nhead, B, S, E):
    layer = pl.program_id(0)
    nlayer = pl.num_programs(0)
    Dh = E // nhead

    # Load the input activations into the resident VMEM scratch once.
    @pl.when(layer == 0)
    def _():
        act_ref[...] = x_ref[...].reshape(B * S, E).astype(jnp.float32)

    act = act_ref[...]                                        # (B*S, E) f32

    # ---- in-projection (weights pre-transposed: (E, 3E); q scale pre-folded) --
    in_w = inw_ref[0]                                         # (E, 3E)
    qkv = jnp.dot(act, in_w, preferred_element_type=jnp.float32) + inb_ref[0]

    q = qkv[:, 0 * E:1 * E].reshape(B, S, E)                  # already scaled
    k = qkv[:, 1 * E:2 * E].reshape(B, S, E)
    v = qkv[:, 2 * E:3 * E].reshape(B, S, E)

    # ---- attention: per-head, batched over B.  The output projection is
    #      accumulated inside the head loop (static slices of the pre-transposed
    #      out_w), so no concatenate / relayout is needed. ----------------------
    out_w = outw_ref[0]                                       # (E, E)
    attn = jnp.zeros((B * S, E), jnp.float32)
    for h in range(nhead):                                    # nhead: small, static
        qh = q[:, :, h * Dh:(h + 1) * Dh]                     # (B, S, Dh)
        kh = k[:, :, h * Dh:(h + 1) * Dh]
        vh = v[:, :, h * Dh:(h + 1) * Dh]
        s = jnp.einsum("bqd,bkd->bqk", qh, kh,
                       preferred_element_type=jnp.float32)    # (B, S, S)
        m = jnp.max(s, axis=-1, keepdims=True)
        e = jnp.exp(s - m)
        p = e * pl.reciprocal(jnp.sum(e, axis=-1, keepdims=True))
        ctx = jnp.einsum("bqk,bkd->bqd", p, vh,
                         preferred_element_type=jnp.float32)  # (B, S, Dh)
        attn = attn + jnp.dot(ctx.reshape(B * S, Dh),
                              out_w[h * Dh:(h + 1) * Dh, :],
                              preferred_element_type=jnp.float32)
    attn = attn + outb_ref[0]

    # ---- residual (dropout == identity in eval) + LayerNorm -------------------
    src = act + attn
    mean = jnp.mean(src, axis=-1, keepdims=True)
    var = jnp.mean((src - mean) ** 2, axis=-1, keepdims=True)
    y = (src - mean) * jax.lax.rsqrt(var + 1e-5) * g_ref[0] + b_ref[0]
    act_ref[...] = y

    # ---- final decoder fused into the last grid step; lane-dense output ------
    @pl.when(layer == nlayer - 1)
    def _():
        dec = jax.lax.dot_general(
            decw_ref[...], y,
            dimension_numbers=(((1,), (1,)), ((), ())),
            preferred_element_type=jnp.float32)               # (O, B*S)
        o_ref[...] = (dec + decb_ref[...]).astype(o_ref.dtype)


# ----------------------------------------------------------------------------
# One-time weight preparation (transpose / stack / fold q-scale).
# ----------------------------------------------------------------------------
def prepare_params(params, *, nhead):
    layers = params["layers"]
    E = layers[0]["in_proj_w"].shape[1]
    O = params["dec_w"].shape[0]
    Dh = E // nhead
    scale = 1.0 / math.sqrt(Dh)

    in_w_t, in_b, out_w_t, out_b, gamma, beta = [], [], [], [], [], []
    for lp in layers:
        w = lp["in_proj_w"]                                   # (3E, E)
        b = lp["in_proj_b"]                                   # (3E,)
        w = jnp.concatenate([w[:E] * scale, w[E:]], axis=0)   # fold softmax scale
        b = jnp.concatenate([b[:E] * scale, b[E:]], axis=0)   # into the q slice
        in_w_t.append(w.T)                                    # (E, 3E)
        in_b.append(b.reshape(1, 3 * E))
        out_w_t.append(lp["out_proj_w"].T)                    # (E, E)
        out_b.append(lp["out_proj_b"].reshape(1, E))
        gamma.append(lp["ln_gamma"].reshape(1, E))
        beta.append(lp["ln_beta"].reshape(1, E))

    return {
        "in_w_t": jnp.stack(in_w_t),                          # (L, E, 3E)
        "in_b": jnp.stack(in_b),                              # (L, 1, 3E)
        "out_w_t": jnp.stack(out_w_t),                        # (L, E, E)
        "out_b": jnp.stack(out_b),                            # (L, 1, E)
        "gamma": jnp.stack(gamma),                            # (L, 1, E)
        "beta": jnp.stack(beta),                              # (L, 1, E)
        "dec_w": params["dec_w"],                             # (O, E)
        "dec_b": params["dec_b"].reshape(O, 1),               # (O, 1)
    }


# ----------------------------------------------------------------------------
# Wrapper: single pallas_call over the layer grid.
# ----------------------------------------------------------------------------
def transformer_model(x, prepped, *, nhead):
    """Full TransformerModel forward (eval mode) in a single pallas_call."""
    B, S, E = x.shape
    L = prepped["in_w_t"].shape[0]
    O = prepped["dec_w"].shape[0]

    # Explicit VMEM budget: double-buffered per-layer weights + resident
    # activations / x / decoder blocks, with headroom; clamp to the v7x 64 MiB.
    f32 = 4
    per_layer_w = (E * 3 * E + 3 * E + E * E + 3 * E) * f32
    resident = (2 * B * S * E + O * E + O + O * B * S) * f32
    vmem_limit = int(min(max(2 * per_layer_w + resident + (8 << 20), 32 << 20),
                         64 << 20))

    kern = functools.partial(_fused_transformer_kernel,
                             nhead=nhead, B=B, S=S, E=E)
    out = pl.pallas_call(
        kern,
        out_shape=jax.ShapeDtypeStruct((O, B * S), x.dtype),
        grid_spec=pltpu.PrefetchScalarGridSpec(
            num_scalar_prefetch=0,
            grid=(L,),
            in_specs=[
                pl.BlockSpec((B, S, E), lambda l: (0, 0, 0)),       # x (resident)
                pl.BlockSpec((1, E, 3 * E), lambda l: (l, 0, 0)),   # in_w^T (streamed)
                pl.BlockSpec((1, 1, 3 * E), lambda l: (l, 0, 0)),   # in_b
                pl.BlockSpec((1, E, E), lambda l: (l, 0, 0)),       # out_w^T
                pl.BlockSpec((1, 1, E), lambda l: (l, 0, 0)),       # out_b
                pl.BlockSpec((1, 1, E), lambda l: (l, 0, 0)),       # ln gamma
                pl.BlockSpec((1, 1, E), lambda l: (l, 0, 0)),       # ln beta
                pl.BlockSpec((O, E), lambda l: (0, 0)),             # dec_w (resident)
                pl.BlockSpec((O, 1), lambda l: (0, 0)),             # dec_b
            ],
            out_specs=pl.BlockSpec((O, B * S), lambda l: (0, 0)),
            scratch_shapes=[pltpu.VMEM((B * S, E), jnp.float32)],
        ),
        compiler_params=pltpu.CompilerParams(
            dimension_semantics=("arbitrary",),
            vmem_limit_bytes=vmem_limit,
        ),
    )(x, prepped["in_w_t"], prepped["in_b"], prepped["out_w_t"],
      prepped["out_b"], prepped["gamma"], prepped["beta"],
      prepped["dec_w"], prepped["dec_b"])

    # Lane-dense (O, B*S) slab -> (B, S, O); pure layout plumbing in XLA.
    return out.T.reshape(B, S, O)


# ----------------------------------------------------------------------------
# Pure-JAX reference (for correctness check)
# ----------------------------------------------------------------------------
def reference_model(x, params, *, nhead):
    def layer_fwd(x, lp):
        B, S, E = x.shape
        Dh = E // nhead
        qkv = jnp.einsum("bse,fe->bsf", x, lp["in_proj_w"]) + lp["in_proj_b"]
        q, k, v = qkv[..., :E], qkv[..., E:2 * E], qkv[..., 2 * E:]
        outs = []
        for h in range(nhead):
            qh = q[..., h * Dh:(h + 1) * Dh]
            kh = k[..., h * Dh:(h + 1) * Dh]
            vh = v[..., h * Dh:(h + 1) * Dh]
            s = jnp.einsum("bqd,bkd->bqk", qh, kh) / math.sqrt(Dh)
            p = jax.nn.softmax(s, axis=-1)
            outs.append(jnp.einsum("bqk,bkd->bqd", p, vh))
        attn = jnp.concatenate(outs, axis=-1)
        attn = jnp.einsum("bse,fe->bsf", attn, lp["out_proj_w"]) + lp["out_proj_b"]
        src = x + attn
        mean = src.mean(-1, keepdims=True)
        var = ((src - mean) ** 2).mean(-1, keepdims=True)
        return (src - mean) / jnp.sqrt(var + 1e-5) * lp["ln_gamma"] + lp["ln_beta"]

    for lp in params["layers"]:
        x = layer_fwd(x, lp)
    return jnp.einsum("bse,oe->bso", x, params["dec_w"]) + params["dec_b"]


# ----------------------------------------------------------------------------
# Deterministic parameter init (shapes follow the PyTorch module __init__)
# ----------------------------------------------------------------------------
def init_params(key, d_model, out_dim, nlayer):
    params = {"layers": []}
    for _ in range(nlayer):
        key, k1, k2 = jax.random.split(key, 3)
        bound_in = math.sqrt(6.0 / (3 * d_model + d_model))   # xavier_uniform
        bound_out = math.sqrt(6.0 / (d_model + d_model))
        params["layers"].append({
            "in_proj_w": jax.random.uniform(k1, (3 * d_model, d_model),
                                            jnp.float32, -bound_in, bound_in),
            "in_proj_b": jnp.zeros((3 * d_model,), jnp.float32),
            "out_proj_w": jax.random.uniform(k2, (d_model, d_model),
                                             jnp.float32, -bound_out, bound_out),
            "out_proj_b": jnp.zeros((d_model,), jnp.float32),
            "ln_gamma": jnp.ones((d_model,), jnp.float32),
            "ln_beta": jnp.zeros((d_model,), jnp.float32),
        })
    key, kd = jax.random.split(key)
    bound_dec = math.sqrt(6.0 / d_model)                       # kaiming_uniform fan_in
    params["dec_w"] = jax.random.uniform(kd, (out_dim, d_model),
                                         jnp.float32, -bound_dec, bound_dec)
    params["dec_b"] = jnp.zeros((out_dim,), jnp.float32)
    return params


# ----------------------------------------------------------------------------
if __name__ == "__main__":
    # Small shapes consistent with the module's forward:
    # x: (B, S, d_model); d_model plays the role of input_dim (=6196 originally).
    B, S, D_MODEL = 2, 8, 32
    NHEAD, NLAYER, OUT_DIM = 2, 6, 1

    key = jax.random.PRNGKey(0)
    key, kx = jax.random.split(key)
    x = jax.random.normal(kx, (B, S, D_MODEL), jnp.float32)
    params = init_params(key, D_MODEL, OUT_DIM, NLAYER)

    # One-time weight prep (transpose / stack / fold softmax scale), then jit
    # the fused forward so the per-call path is just the single pallas_call.
    prepped = jax.block_until_ready(prepare_params(params, nhead=NHEAD))
    fwd = jax.jit(functools.partial(transformer_model, nhead=NHEAD))

    y = fwd(x, prepped)
    y = jax.block_until_ready(y)

    y_ref = reference_model(x, params, nhead=NHEAD)
    np.testing.assert_allclose(np.asarray(y), np.asarray(y_ref), rtol=1e-4, atol=1e-4)

    assert y.shape == (B, S, OUT_DIM)
    print("KERNEL_OK")
</pallas_src>

<mosaic_0001>
module attributes {stable_mosaic.version = 11 : i64} {
  func.func @_fused_transformer_kernel(%arg0: i32, %arg1: memref<2x8x32xf32, #tpu.memory_space<vmem>>, %arg2: memref<1x32x96xf32, #tpu.memory_space<vmem>>, %arg3: memref<1x1x96xf32, #tpu.memory_space<vmem>>, %arg4: memref<1x32x32xf32, #tpu.memory_space<vmem>>, %arg5: memref<1x1x32xf32, #tpu.memory_space<vmem>>, %arg6: memref<1x1x32xf32, #tpu.memory_space<vmem>>, %arg7: memref<1x1x32xf32, #tpu.memory_space<vmem>>, %arg8: memref<1x32xf32, #tpu.memory_space<vmem>>, %arg9: memref<1x1xf32, #tpu.memory_space<vmem>>, %arg10: memref<1x16xf32, #tpu.memory_space<vmem>>, %arg11: memref<16x32xf32, #tpu.memory_space<vmem>>) attributes {dimension_semantics = [#tpu.dimension_semantics<arbitrary>], iteration_bounds = array<i64: 6>, scalar_prefetch = 0 : i64, scratch_operands = 1 : i64, tpu.core_type = #tpu.core_type<tc>, window_params = [{pipeline_mode = #tpu.pipeline_mode<synchronous>, transform_indices = @transform_0, window_bounds = array<i64: 2, 8, 32>}, {transform_indices = @transform_1, window_bounds = array<i64: 1, 32, 96>}, {transform_indices = @transform_2, window_bounds = array<i64: 1, 1, 96>}, {transform_indices = @transform_3, window_bounds = array<i64: 1, 32, 32>}, {transform_indices = @transform_4, window_bounds = array<i64: 1, 1, 32>}, {transform_indices = @transform_5, window_bounds = array<i64: 1, 1, 32>}, {transform_indices = @transform_6, window_bounds = array<i64: 1, 1, 32>}, {pipeline_mode = #tpu.pipeline_mode<synchronous>, transform_indices = @transform_7, window_bounds = array<i64: 1, 32>}, {pipeline_mode = #tpu.pipeline_mode<synchronous>, transform_indices = @transform_8, window_bounds = array<i64: 1, 1>}, {pipeline_mode = #tpu.pipeline_mode<synchronous>, transform_indices = @transform_9, window_bounds = array<i64: 1, 16>}]} {
    %c0_i32 = arith.constant 0 : i32
    %0 = arith.cmpi eq, %arg0, %c0_i32 : i32
    %1 = arith.extui %0 : i1 to i32
    %c0_i32_0 = arith.constant 0 : i32
    %2 = arith.cmpi ne, %1, %c0_i32_0 : i32
    scf.if %2 {
      %c0_39 = arith.constant 0 : index
      %c0_40 = arith.constant 0 : index
      %c0_41 = arith.constant 0 : index
      %93 = vector.load %arg1[%c0_39, %c0_40, %c0_41] : memref<2x8x32xf32, #tpu.memory_space<vmem>>, vector<2x8x32xf32>
      %94 = vector.shape_cast %93 : vector<2x8x32xf32> to vector<16x32xf32>
      %c0_42 = arith.constant 0 : index
      %c0_43 = arith.constant 0 : index
      %95 = vector.load %arg11[%c0_42, %c0_43] : memref<16x32xf32, #tpu.memory_space<vmem>>, vector<16x32xf32>
      tpu.vector_store %arg11[%c0_42, %c0_43], %94 {strides = array<i32>} : memref<16x32xf32, #tpu.memory_space<vmem>>, vector<16x32xf32>,
    } else {
    }
    %c0 = arith.constant 0 : index
    %c0_1 = arith.constant 0 : index
    %3 = vector.load %arg11[%c0, %c0_1] : memref<16x32xf32, #tpu.memory_space<vmem>>, vector<16x32xf32>
    %c0_2 = arith.constant 0 : index
    %c0_3 = arith.constant 0 : index
    %c0_4 = arith.constant 0 : index
    %4 = vector.load %arg2[%c0_2, %c0_3, %c0_4] : memref<1x32x96xf32, #tpu.memory_space<vmem>>, vector<1x32x96xf32>
    %5 = vector.shape_cast %4 : vector<1x32x96xf32> to vector<32x96xf32>
    %cst = arith.constant dense<0.000000e+00> : vector<16x96xf32>
    %6 = tpu.matmul %3, %5, %cst {dimension_numbers = #tpu.dot_dimension_numbers<[1], [0], [0], [1], [0, 0, 1, 1], [], []>} : vector<16x32xf32>, vector<32x96xf32>, vector<16x96xf32> -> vector<16x96xf32>
    %c0_5 = arith.constant 0 : index
    %c0_6 = arith.constant 0 : index
    %c0_7 = arith.constant 0 : index
    %7 = vector.load %arg3[%c0_5, %c0_6, %c0_7] : memref<1x1x96xf32, #tpu.memory_space<vmem>>, vector<1x1x96xf32>
    %8 = vector.shape_cast %7 : vector<1x1x96xf32> to vector<1x96xf32>
    %9 = vector.broadcast %8 : vector<1x96xf32> to vector<16x96xf32>
    %10 = arith.addf %6, %9 : vector<16x96xf32>
    %11 = vector.extract_strided_slice %10 {offsets = [0, 0], sizes = [16, 32], strides = [1, 1]} : vector<16x96xf32> to vector<16x32xf32>
    %12 = vector.shape_cast %11 : vector<16x32xf32> to vector<2x8x32xf32>
    %13 = vector.extract_strided_slice %10 {offsets = [0, 32], sizes = [16, 32], strides = [1, 1]} : vector<16x96xf32> to vector<16x32xf32>
    %14 = vector.shape_cast %13 : vector<16x32xf32> to vector<2x8x32xf32>
    %15 = vector.extract_strided_slice %10 {offsets = [0, 64], sizes = [16, 32], strides = [1, 1]} : vector<16x96xf32> to vector<16x32xf32>
    %16 = vector.shape_cast %15 : vector<16x32xf32> to vector<2x8x32xf32>
    %c0_8 = arith.constant 0 : index
    %c0_9 = arith.constant 0 : index
    %c0_10 = arith.constant 0 : index
    %17 = vector.load %arg4[%c0_8, %c0_9, %c0_10] : memref<1x32x32xf32, #tpu.memory_space<vmem>>, vector<1x32x32xf32>
    %18 = vector.shape_cast %17 : vector<1x32x32xf32> to vector<32x32xf32>
    %cst_11 = arith.constant 0.000000e+00 : f32
    %19 = vector.broadcast %cst_11 : f32 to vector<16x32xf32>
    %20 = vector.extract_strided_slice %12 {offsets = [0, 0, 0], sizes = [2, 8, 16], strides = [1, 1, 1]} : vector<2x8x32xf32> to vector<2x8x16xf32>
    %21 = vector.extract_strided_slice %14 {offsets = [0, 0, 0], sizes = [2, 8, 16], strides = [1, 1, 1]} : vector<2x8x32xf32> to vector<2x8x16xf32>
    %22 = vector.extract_strided_slice %16 {offsets = [0, 0, 0], sizes = [2, 8, 16], strides = [1, 1, 1]} : vector<2x8x32xf32> to vector<2x8x16xf32>
    "tpu.trace_start"() <{level = 10 : i32, message = "bqd,bkd->bqk"}> : () -> ()
    %cst_12 = arith.constant dense<0.000000e+00> : vector<2x8x8xf32>
    %23 = tpu.matmul %20, %21, %cst_12 {dimension_numbers = #tpu.dot_dimension_numbers<[2], [2], [1], [1], [0, 0, 0, 1, 1, 1], [0], [0]>} : vector<2x8x16xf32>, vector<2x8x16xf32>, vector<2x8x8xf32> -> vector<2x8x8xf32>
    "tpu.trace_stop"() : () -> ()
    %cst_13 = arith.constant dense<0xFF800000> : vector<2x8xf32>
    %24 = vector.multi_reduction <maximumf>, %23, %cst_13 [2] : vector<2x8x8xf32> to vector<2x8xf32>
    %25 = vector.shape_cast %24 : vector<2x8xf32> to vector<2x8x1xf32>
    %26 = vector.broadcast %25 : vector<2x8x1xf32> to vector<2x8x8xf32>
    %27 = arith.subf %23, %26 : vector<2x8x8xf32>
    %28 = math.exp %27 : vector<2x8x8xf32>
    %cst_14 = arith.constant dense<0.000000e+00> : vector<2x8xf32>
    %29 = vector.multi_reduction <add>, %28, %cst_14 [2] : vector<2x8x8xf32> to vector<2x8xf32>
    %30 = vector.shape_cast %29 : vector<2x8xf32> to vector<2x8x1xf32>
    %31 = tpu.reciprocal %30 : vector<2x8x1xf32> -> vector<2x8x1xf32>
    %32 = vector.broadcast %31 : vector<2x8x1xf32> to vector<2x8x8xf32>
    %33 = arith.mulf %28, %32 : vector<2x8x8xf32>
    "tpu.trace_start"() <{level = 10 : i32, message = "bqk,bkd->bqd"}> : () -> ()
    %cst_15 = arith.constant dense<0.000000e+00> : vector<2x8x16xf32>
    %34 = tpu.matmul %33, %22, %cst_15 {dimension_numbers = #tpu.dot_dimension_numbers<[2], [1], [1], [2], [0, 0, 0, 1, 1, 2], [0], [0]>} : vector<2x8x8xf32>, vector<2x8x16xf32>, vector<2x8x16xf32> -> vector<2x8x16xf32>
    "tpu.trace_stop"() : () -> ()
    %35 = vector.shape_cast %34 : vector<2x8x16xf32> to vector<16x16xf32>
    %36 = vector.extract_strided_slice %18 {offsets = [0, 0], sizes = [16, 32], strides = [1, 1]} : vector<32x32xf32> to vector<16x32xf32>
    %cst_16 = arith.constant dense<0.000000e+00> : vector<16x32xf32>
    %37 = tpu.matmul %35, %36, %cst_16 {dimension_numbers = #tpu.dot_dimension_numbers<[1], [0], [0], [1], [0, 0, 1, 1], [], []>} : vector<16x16xf32>, vector<16x32xf32>, vector<16x32xf32> -> vector<16x32xf32>
    %38 = arith.addf %19, %37 : vector<16x32xf32>
    %39 = vector.extract_strided_slice %12 {offsets = [0, 0, 16], sizes = [2, 8, 16], strides = [1, 1, 1]} : vector<2x8x32xf32> to vector<2x8x16xf32>
    %40 = vector.extract_strided_slice %14 {offsets = [0, 0, 16], sizes = [2, 8, 16], strides = [1, 1, 1]} : vector<2x8x32xf32> to vector<2x8x16xf32>
    %41 = vector.extract_strided_slice %16 {offsets = [0, 0, 16], sizes = [2, 8, 16], strides = [1, 1, 1]} : vector<2x8x32xf32> to vector<2x8x16xf32>
    "tpu.trace_start"() <{level = 10 : i32, message = "bqd,bkd->bqk"}> : () -> ()
    %cst_17 = arith.constant dense<0.000000e+00> : vector<2x8x8xf32>
    %42 = tpu.matmul %39, %40, %cst_17 {dimension_numbers = #tpu.dot_dimension_numbers<[2], [2], [1], [1], [0, 0, 0, 1, 1, 1], [0], [0]>} : vector<2x8x16xf32>, vector<2x8x16xf32>, vector<2x8x8xf32> -> vector<2x8x8xf32>
    "tpu.trace_stop"() : () -> ()
    %cst_18 = arith.constant dense<0xFF800000> : vector<2x8xf32>
    %43 = vector.multi_reduction <maximumf>, %42, %cst_18 [2] : vector<2x8x8xf32> to vector<2x8xf32>
    %44 = vector.shape_cast %43 : vector<2x8xf32> to vector<2x8x1xf32>
    %45 = vector.broadcast %44 : vector<2x8x1xf32> to vector<2x8x8xf32>
    %46 = arith.subf %42, %45 : vector<2x8x8xf32>
    %47 = math.exp %46 : vector<2x8x8xf32>
    %cst_19 = arith.constant dense<0.000000e+00> : vector<2x8xf32>
    %48 = vector.multi_reduction <add>, %47, %cst_19 [2] : vector<2x8x8xf32> to vector<2x8xf32>
    %49 = vector.shape_cast %48 : vector<2x8xf32> to vector<2x8x1xf32>
    %50 = tpu.reciprocal %49 : vector<2x8x1xf32> -> vector<2x8x1xf32>
    %51 = vector.broadcast %50 : vector<2x8x1xf32> to vector<2x8x8xf32>
    %52 = arith.mulf %47, %51 : vector<2x8x8xf32>
    "tpu.trace_start"() <{level = 10 : i32, message = "bqk,bkd->bqd"}> : () -> ()
    %cst_20 = arith.constant dense<0.000000e+00> : vector<2x8x16xf32>
    %53 = tpu.matmul %52, %41, %cst_20 {dimension_numbers = #tpu.dot_dimension_numbers<[2], [1], [1], [2], [0, 0, 0, 1, 1, 2], [0], [0]>} : vector<2x8x8xf32>, vector<2x8x16xf32>, vector<2x8x16xf32> -> vector<2x8x16xf32>
    "tpu.trace_stop"() : () -> ()
    %54 = vector.shape_cast %53 : vector<2x8x16xf32> to vector<16x16xf32>
    %55 = vector.extract_strided_slice %18 {offsets = [16, 0], sizes = [16, 32], strides = [1, 1]} : vector<32x32xf32> to vector<16x32xf32>
    %cst_21 = arith.constant dense<0.000000e+00> : vector<16x32xf32>
    %56 = tpu.matmul %54, %55, %cst_21 {dimension_numbers = #tpu.dot_dimension_numbers<[1], [0], [0], [1], [0, 0, 1, 1], [], []>} : vector<16x16xf32>, vector<16x32xf32>, vector<16x32xf32> -> vector<16x32xf32>
    %57 = arith.addf %38, %56 : vector<16x32xf32>
    %c0_22 = arith.constant 0 : index
    %c0_23 = arith.constant 0 : index
    %c0_24 = arith.constant 0 : index
    %58 = vector.load %arg5[%c0_22, %c0_23, %c0_24] : memref<1x1x32xf32, #tpu.memory_space<vmem>>, vector<1x1x32xf32>
    %59 = vector.shape_cast %58 : vector<1x1x32xf32> to vector<1x32xf32>
    %60 = vector.broadcast %59 : vector<1x32xf32> to vector<16x32xf32>
    %61 = arith.addf %57, %60 : vector<16x32xf32>
    %62 = arith.addf %3, %61 : vector<16x32xf32>
    %cst_25 = arith.constant dense<0.000000e+00> : vector<16xf32>
    %63 = vector.multi_reduction <add>, %62, %cst_25 [1] : vector<16x32xf32> to vector<16xf32>
    %64 = vector.shape_cast %63 : vector<16xf32> to vector<16x1xf32>
    %cst_26 = arith.constant 3.200000e+01 : f32
    %65 = vector.broadcast %cst_26 : f32 to vector<16x1xf32>
    %66 = arith.divf %64, %65 : vector<16x1xf32>
    %67 = vector.broadcast %66 : vector<16x1xf32> to vector<16x32xf32>
    %68 = arith.subf %62, %67 : vector<16x32xf32>
    %69 = arith.mulf %68, %68 : vector<16x32xf32>
    %cst_27 = arith.constant dense<0.000000e+00> : vector<16xf32>
    %70 = vector.multi_reduction <add>, %69, %cst_27 [1] : vector<16x32xf32> to vector<16xf32>
    %71 = vector.shape_cast %70 : vector<16xf32> to vector<16x1xf32>
    %cst_28 = arith.constant 3.200000e+01 : f32
    %72 = vector.broadcast %cst_28 : f32 to vector<16x1xf32>
    %73 = arith.divf %71, %72 : vector<16x1xf32>
    %74 = vector.broadcast %66 : vector<16x1xf32> to vector<16x32xf32>
    %75 = arith.subf %62, %74 : vector<16x32xf32>
    %cst_29 = arith.constant 9.99999974E-6 : f32
    %76 = vector.broadcast %cst_29 : f32 to vector<16x1xf32>
    %77 = arith.addf %73, %76 : vector<16x1xf32>
    %78 = math.rsqrt %77 : vector<16x1xf32>
    %79 = vector.broadcast %78 : vector<16x1xf32> to vector<16x32xf32>
    %80 = arith.mulf %75, %79 : vector<16x32xf32>
    %c0_30 = arith.constant 0 : index
    %c0_31 = arith.constant 0 : index
    %c0_32 = arith.constant 0 : index
    %81 = vector.load %arg6[%c0_30, %c0_31, %c0_32] : memref<1x1x32xf32, #tpu.memory_space<vmem>>, vector<1x1x32xf32>
    %82 = vector.shape_cast %81 : vector<1x1x32xf32> to vector<1x32xf32>
    %83 = vector.broadcast %82 : vector<1x32xf32> to vector<16x32xf32>
    %84 = arith.mulf %80, %83 : vector<16x32xf32>
    %c0_33 = arith.constant 0 : index
    %c0_34 = arith.constant 0 : index
    %c0_35 = arith.constant 0 : index
    %85 = vector.load %arg7[%c0_33, %c0_34, %c0_35] : memref<1x1x32xf32, #tpu.memory_space<vmem>>, vector<1x1x32xf32>
    %86 = vector.shape_cast %85 : vector<1x1x32xf32> to vector<1x32xf32>
    %87 = vector.broadcast %86 : vector<1x32xf32> to vector<16x32xf32>
    %88 = arith.addf %84, %87 : vector<16x32xf32>
    %c0_36 = arith.constant 0 : index
    %c0_37 = arith.constant 0 : index
    %89 = vector.load %arg11[%c0_36, %c0_37] : memref<16x32xf32, #tpu.memory_space<vmem>>, vector<16x32xf32>
    tpu.vector_store %arg11[%c0_36, %c0_37], %88 {strides = array<i32>} : memref<16x32xf32, #tpu.memory_space<vmem>>, vector<16x32xf32>,
    %c5_i32 = arith.constant 5 : i32
    %90 = arith.cmpi eq, %arg0, %c5_i32 : i32
    %91 = arith.extui %90 : i1 to i32
    %c0_i32_38 = arith.constant 0 : i32
    %92 = arith.cmpi ne, %91, %c0_i32_38 : i32
    scf.if %92 {
      %c0_39 = arith.constant 0 : index
      %c0_40 = arith.constant 0 : index
      %93 = vector.load %arg8[%c0_39, %c0_40] : memref<1x32xf32, #tpu.memory_space<vmem>>, vector<1x32xf32>
      %cst_41 = arith.constant dense<0.000000e+00> : vector<1x16xf32>
      %94 = tpu.matmul %93, %88, %cst_41 {dimension_numbers = #tpu.dot_dimension_numbers<[1], [1], [0], [0], [0, 0, 1, 0], [], []>} : vector<1x32xf32>, vector<16x32xf32>, vector<1x16xf32> -> vector<1x16xf32>
      %c0_42 = arith.constant 0 : index
      %c0_43 = arith.constant 0 : index
      %95 = vector.load %arg9[%c0_42, %c0_43] : memref<1x1xf32, #tpu.memory_space<vmem>>, vector<1x1xf32>
      %96 = vector.broadcast %95 : vector<1x1xf32> to vector<1x16xf32>
      %97 = arith.addf %94, %96 : vector<1x16xf32>
      %c0_44 = arith.constant 0 : index
      %c0_45 = arith.constant 0 : index
      %98 = vector.load %arg10[%c0_44, %c0_45] : memref<1x16xf32, #tpu.memory_space<vmem>>, vector<1x16xf32>
      tpu.vector_store %arg10[%c0_44, %c0_45], %97 {strides = array<i32>} : memref<1x16xf32, #tpu.memory_space<vmem>>, vector<1x16xf32>,
    } else {
    }
    return
  }
  func.func @transform_0(%arg0: i32) -> (i32, i32, i32) {
    %c0_i32 = arith.constant 0 : i32
    %c0_i32_0 = arith.constant 0 : i32
    %c0_i32_1 = arith.constant 0 : i32
    %c0_i32_2 = arith.constant 0 : i32
    return %c0_i32, %c0_i32_0, %c0_i32_1 : i32, i32, i32
  }
  func.func @transform_1(%arg0: i32) -> (i32, i32, i32) {
    %c0_i32 = arith.constant 0 : i32
    %c0_i32_0 = arith.constant 0 : i32
    %c0_i32_1 = arith.constant 0 : i32
    return %arg0, %c0_i32, %c0_i32_0 : i32, i32, i32
  }
  func.func @transform_2(%arg0: i32) -> (i32, i32, i32) {
    %c0_i32 = arith.constant 0 : i32
    %c0_i32_0 = arith.constant 0 : i32
    %c0_i32_1 = arith.constant 0 : i32
    return %arg0, %c0_i32, %c0_i32_0 : i32, i32, i32
  }
  func.func @transform_3(%arg0: i32) -> (i32, i32, i32) {
    %c0_i32 = arith.constant 0 : i32
    %c0_i32_0 = arith.constant 0 : i32
    %c0_i32_1 = arith.constant 0 : i32
    return %arg0, %c0_i32, %c0_i32_0 : i32, i32, i32
  }
  func.func @transform_4(%arg0: i32) -> (i32, i32, i32) {
    %c0_i32 = arith.constant 0 : i32
    %c0_i32_0 = arith.constant 0 : i32
    %c0_i32_1 = arith.constant 0 : i32
    return %arg0, %c0_i32, %c0_i32_0 : i32, i32, i32
  }
  func.func @transform_5(%arg0: i32) -> (i32, i32, i32) {
    %c0_i32 = arith.constant 0 : i32
    %c0_i32_0 = arith.constant 0 : i32
    %c0_i32_1 = arith.constant 0 : i32
    return %arg0, %c0_i32, %c0_i32_0 : i32, i32, i32
  }
  func.func @transform_6(%arg0: i32) -> (i32, i32, i32) {
    %c0_i32 = arith.constant 0 : i32
    %c0_i32_0 = arith.constant 0 : i32
    %c0_i32_1 = arith.constant 0 : i32
    return %arg0, %c0_i32, %c0_i32_0 : i32, i32, i32
  }
  func.func @transform_7(%arg0: i32) -> (i32, i32) {
    %c0_i32 = arith.constant 0 : i32
    %c0_i32_0 = arith.constant 0 : i32
    %c0_i32_1 = arith.constant 0 : i32
    return %c0_i32, %c0_i32_0 : i32, i32
  }
  func.func @transform_8(%arg0: i32) -> (i32, i32) {
    %c0_i32 = arith.constant 0 : i32
    %c0_i32_0 = arith.constant 0 : i32
    %c0_i32_1 = arith.constant 0 : i32
    return %c0_i32, %c0_i32_0 : i32, i32
  }
  func.func @transform_9(%arg0: i32) -> (i32, i32) {
    %c0_i32 = arith.constant 0 : i32
    %c0_i32_0 = arith.constant 0 : i32
    %c0_i32_1 = arith.constant 0 : i32
    return %c0_i32, %c0_i32_0 : i32, i32
  }
}

</mosaic_0001>

<llo_original>
// kernel: transformer_model.1
$region0: #{transformer_model.1}
  #allocation0 [shape = 'u32[]', space=smem, size = 0x4, offset = 0x4, fixed_abs, tag = 'smem constant byte address 0x4 - core index']
  #allocation1 [shape = 'u32[144,128]{1,0:T(1,128)}', space=vmem, size = 0x12000, scoped, tag = 'internal scratch']
  #allocation2 [shape = 'f32[16,32]{1,0:T(8,128)}', space=vmem, size = 0x2000, scoped, tag = 'scratch operand']
  #allocation3 [shape = 'f32[1,1]{1,0:T(1,128)S(1)}', space=vmem, size = 0x200, scoped, tag = 'scoped memory for transformer_model.1']
  %s0 = inlined_call_operand.hbm [shape: f32[2,8,32], index: 0, kind: input, shape index: {}]
  %s1 = inlined_call_operand.hbm [shape: f32[6,32,96], index: 1, kind: input, shape index: {}]
  %s2 = inlined_call_operand.vmem [shape: f32[6,1,96], index: 2, kind: input, shape index: {}]
  %s3 = inlined_call_operand.hbm [shape: f32[6,32,32], index: 3, kind: input, shape index: {}]
  %s4 = inlined_call_operand.vmem [shape: f32[6,1,32], index: 4, kind: input, shape index: {}]
  %s5 = inlined_call_operand.hbm [shape: f32[6,1,32], index: 5, kind: input, shape index: {}]
  %s6 = inlined_call_operand.hbm [shape: f32[6,1,32], index: 6, kind: input, shape index: {}]
  %s7 = inlined_call_operand.vmem [shape: f32[1,32], index: 7, kind: input, shape index: {}]
  %s8 = inlined_call_operand.<no memory space> [shape: f32[1,1], index: 8, kind: input, shape index: {}]
  %s9 = inlined_call_operand.vmem [shape: f32[1,16], index: 9, kind: output, shape index: {}]
  %s10 = sld [smem:[#allocation0]]
  $region97: #{transformer_model.1} parent=0
    _
  %s12 = ssub.s32 1, %s10
  %s13 = scalar_select 0, %s12, %s10
  %v14 = vstv %s8
  %15 = vst [vmem:[#allocation3] sm:$0x1] %v14
  $region1: #{transformer_model.1} parent=0
    #allocation4 [shape = 'u8[8192]{0}', space=vmem, size = 0x2000, scoped, tag = 'input window, operand 0, single buffered']
    #allocation5 [shape = 's32[2]{0}', space=sflag, size = 0x8, scoped, tag = 'scoped memory for transformer_model.1']
    #allocation6 [shape = 'u8[32768]{0}', space=vmem, size = 0x8000, scoped, tag = 'input window, operand 1']
    #allocation7 [shape = 's32[2]{0}', space=sflag, size = 0x8, scoped, tag = 'scoped memory for transformer_model.1']
    #allocation8 [shape = 'u8[32768]{0}', space=vmem, size = 0x8000, scoped, tag = 'input window, operand 3']
    #allocation9 [shape = 'u8[1024]{0}', space=vmem, size = 0x400, scoped, tag = 'input window, operand 5']
    #allocation10 [shape = 's32[2]{0}', space=sflag, size = 0x8, scoped, tag = 'scoped memory for transformer_model.1']
    #allocation11 [shape = 'u8[1024]{0}', space=vmem, size = 0x400, scoped, tag = 'input window, operand 6']
    %16 = vsyncpa [#allocation5], 0
    %17 = vsyncpa [#allocation7], 0
    %s18 = scalar_lea.sflag [#allocation7], 1
    %19 = vsyncpa %s18, 0
    %20 = vsyncpa [#allocation10], 0
    %s21 = scalar_lea.sflag [#allocation10], 1
    %22 = vsyncpa %s21, 0
    loop: start=0, step=1, limit=8
    $region2: #{transformer_model.1} parent=1 // loop_pre_header
      _
    $region3: #{transformer_model.1} parent=1 // loop_header
      %s24 = sphi 0, %s28
      %p25 = scmp.ge.s32.totalorder %s24, 8
      %s32 = sphi 0, %s32
      %s34 = sphi 0, %s32
      %s35 = sphi 0, %s34
      %s49 = sphi 0, %s35
      %s55 = sphi 0, %s57
      %s58 = sphi 0, %s55
      %s59 = sphi 0, %s58
      %s75 = sphi 0, %s59
      %s81 = sphi 0, %s83
      %s84 = sphi 0, %s81
      %s85 = sphi 0, %s84
      %s101 = sphi 0, %s85
      %s107 = sphi 0, %s109
      %s110 = sphi 0, %s107
      %s111 = sphi 0, %s110
      %s127 = sphi 0, %s111
      %s133 = sphi 0, %s135
      %s136 = sphi 0, %s133
      %s137 = sphi 0, %s136
      %s153 = sphi 0, %s137
      %s159 = sphi 0, %s161
      %s162 = sphi 0, %s159
      %s163 = sphi 0, %s162
      %s179 = sphi 0, %s163
      %s185 = sphi 0, %s187
      %s188 = sphi 0, %s185
      %s189 = sphi 0, %s188
      %s205 = sphi 0, %s189
      %s209 = sphi 0, %s209
      %s211 = sphi 0, %s209
      %s212 = sphi 0, %s211
      %s226 = sphi 0, %s212
      %s230 = sphi 0, %s230
      %s232 = sphi 0, %s230
      %s233 = sphi 0, %s232
      %s247 = sphi 0, %s233
      %s251 = sphi 0, %s251
      %s253 = sphi 0, %s251
      %s254 = sphi 0, %s253
      %s268 = sphi 0, %s254
    $region4: #{transformer_model.1} parent=1 // loop_header_branch
      %27 = sbr.rel (%p25) target = $region8
    $region5: #{transformer_model.1} parent=1 // loop_body
      %s29 = ssub.s32 %s24, 1
      %s30 = ssub.s32 %s24, 2
      %s31 = sadd.s32 %s24, 1
      %s33 = sadd.s32 %s32, 1
      %p36 = scmp.eq.s32.totalorder %s24, 5
      %p37 = scmp.ne.s32.totalorder %s32, %s34
      %p38 = scmp.eq.s32.totalorder %s24, 0
      %p39 = por %p37, %p38
      %p40 = scmp.ne.s32.totalorder %s32, %s34
      %p41 = scmp.eq.s32.totalorder %s29, 5
      %p42 = por %p40, %p41
      %p43 = scmp.ne.s32.totalorder %s34, %s35
      %p44 = scmp.eq.s32.totalorder %s29, 0
      %p45 = por %p43, %p44
      %p46 = scmp.ne.s32.totalorder %s34, %s35
      %p47 = scmp.eq.s32.totalorder %s30, 5
      %p48 = por %p46, %p47
      %p50 = scmp.ne.s32.totalorder %s35, %s49
      %p51 = scmp.eq.s32.totalorder %s30, 0
      %p52 = por %p50, %p51
      %s53 = ssub.s32 %s24, %s31
      %p54 = scmp.eq.s32.totalorder %s53, 0
      %s56 = sadd.s32 %s55, 1
      %s57 = scalar_select %p54, %s55, %s56
      %p60 = pneg %p54
      %p61 = scmp.eq.s32.totalorder %s24, 5
      %p62 = por %p60, %p61
      %p63 = scmp.ne.s32.totalorder %s55, %s58
      %p64 = scmp.eq.s32.totalorder %s24, 0
      %p65 = por %p63, %p64
      %p66 = scmp.ne.s32.totalorder %s55, %s58
      %p67 = scmp.eq.s32.totalorder %s29, 5
      %p68 = por %p66, %p67
      %p69 = scmp.ne.s32.totalorder %s58, %s59
      %p70 = scmp.eq.s32.totalorder %s29, 0
      %p71 = por %p69, %p70
      %p72 = scmp.ne.s32.totalorder %s58, %s59
      %p73 = scmp.eq.s32.totalorder %s30, 5
      %p74 = por %p72, %p73
      %p76 = scmp.ne.s32.totalorder %s59, %s75
      %p77 = scmp.eq.s32.totalorder %s30, 0
      %p78 = por %p76, %p77
      %s79 = ssub.s32 %s24, %s31
      %p80 = scmp.eq.s32.totalorder %s79, 0
      %s82 = sadd.s32 %s81, 1
      %s83 = scalar_select %p80, %s81, %s82
      %p86 = pneg %p80
      %p87 = scmp.eq.s32.totalorder %s24, 5
      %p88 = por %p86, %p87
      %p89 = scmp.ne.s32.totalorder %s81, %s84
      %p90 = scmp.eq.s32.totalorder %s24, 0
      %p91 = por %p89, %p90
      %p92 = scmp.ne.s32.totalorder %s81, %s84
      %p93 = scmp.eq.s32.totalorder %s29, 5
      %p94 = por %p92, %p93
      %p95 = scmp.ne.s32.totalorder %s84, %s85
      %p96 = scmp.eq.s32.totalorder %s29, 0
      %p97 = por %p95, %p96
      %p98 = scmp.ne.s32.totalorder %s84, %s85
      %p99 = scmp.eq.s32.totalorder %s30, 5
      %p100 = por %p98, %p99
      %p102 = scmp.ne.s32.totalorder %s85, %s101
      %p103 = scmp.eq.s32.totalorder %s30, 0
      %p104 = por %p102, %p103
      %s105 = ssub.s32 %s24, %s31
      %p106 = scmp.eq.s32.totalorder %s105, 0
      %s108 = sadd.s32 %s107, 1
      %s109 = scalar_select %p106, %s107, %s108
      %p112 = pneg %p106
      %p113 = scmp.eq.s32.totalorder %s24, 5
      %p114 = por %p112, %p113
      %p115 = scmp.ne.s32.totalorder %s107, %s110
      %p116 = scmp.eq.s32.totalorder %s24, 0
      %p117 = por %p115, %p116
      %p118 = scmp.ne.s32.totalorder %s107, %s110
      %p119 = scmp.eq.s32.totalorder %s29, 5
      %p120 = por %p118, %p119
      %p121 = scmp.ne.s32.totalorder %s110, %s111
      %p122 = scmp.eq.s32.totalorder %s29, 0
      %p123 = por %p121, %p122
      %p124 = scmp.ne.s32.totalorder %s110, %s111
      %p125 = scmp.eq.s32.totalorder %s30, 5
      %p126 = por %p124, %p125
      %p128 = scmp.ne.s32.totalorder %s111, %s127
      %p129 = scmp.eq.s32.totalorder %s30, 0
      %p130 = por %p128, %p129
      %s131 = ssub.s32 %s24, %s31
      %p132 = scmp.eq.s32.totalorder %s131, 0
      %s134 = sadd.s32 %s133, 1
      %s135 = scalar_select %p132, %s133, %s134
      %p138 = pneg %p132
      %p139 = scmp.eq.s32.totalorder %s24, 5
      %p140 = por %p138, %p139
      %p141 = scmp.ne.s32.totalorder %s133, %s136
      %p142 = scmp.eq.s32.totalorder %s24, 0
      %p143 = por %p141, %p142
      %p144 = scmp.ne.s32.totalorder %s133, %s136
      %p145 = scmp.eq.s32.totalorder %s29, 5
      %p146 = por %p144, %p145
      %p147 = scmp.ne.s32.totalorder %s136, %s137
      %p148 = scmp.eq.s32.totalorder %s29, 0
      %p149 = por %p147, %p148
      %p150 = scmp.ne.s32.totalorder %s136, %s137
      %p151 = scmp.eq.s32.totalorder %s30, 5
      %p152 = por %p150, %p151
      %p154 = scmp.ne.s32.totalorder %s137, %s153
      %p155 = scmp.eq.s32.totalorder %s30, 0
      %p156 = por %p154, %p155
      %s157 = ssub.s32 %s24, %s31
      %p158 = scmp.eq.s32.totalorder %s157, 0
      %s160 = sadd.s32 %s159, 1
      %s161 = scalar_select %p158, %s159, %s160
      %p164 = pneg %p158
      %p165 = scmp.eq.s32.totalorder %s24, 5
      %p166 = por %p164, %p165
      %p167 = scmp.ne.s32.totalorder %s159, %s162
      %p168 = scmp.eq.s32.totalorder %s24, 0
      %p169 = por %p167, %p168
      %p170 = scmp.ne.s32.totalorder %s159, %s162
      %p171 = scmp.eq.s32.totalorder %s29, 5
      %p172 = por %p170, %p171
      %p173 = scmp.ne.s32.totalorder %s162, %s163
      %p174 = scmp.eq.s32.totalorder %s29, 0
      %p175 = por %p173, %p174
      %p176 = scmp.ne.s32.totalorder %s162, %s163
      %p177 = scmp.eq.s32.totalorder %s30, 5
      %p178 = por %p176, %p177
      %p180 = scmp.ne.s32.totalorder %s163, %s179
      %p181 = scmp.eq.s32.totalorder %s30, 0
      %p182 = por %p180, %p181
      %s183 = ssub.s32 %s24, %s31
      %p184 = scmp.eq.s32.totalorder %s183, 0
      %s186 = sadd.s32 %s185, 1
      %s187 = scalar_select %p184, %s185, %s186
      %p190 = pneg %p184
      %p191 = scmp.eq.s32.totalorder %s24, 5
      %p192 = por %p190, %p191
      %p193 = scmp.ne.s32.totalorder %s185, %s188
      %p194 = scmp.eq.s32.totalorder %s24, 0
      %p195 = por %p193, %p194
      %p196 = scmp.ne.s32.totalorder %s185, %s188
      %p197 = scmp.eq.s32.totalorder %s29, 5
      %p198 = por %p196, %p197
      %p199 = scmp.ne.s32.totalorder %s188, %s189
      %p200 = scmp.eq.s32.totalorder %s29, 0
      %p201 = por %p199, %p200
      %p202 = scmp.ne.s32.totalorder %s188, %s189
      %p203 = scmp.eq.s32.totalorder %s30, 5
      %p204 = por %p202, %p203
      %p206 = scmp.ne.s32.totalorder %s189, %s205
      %p207 = scmp.eq.s32.totalorder %s30, 0
      %p208 = por %p206, %p207
      %s210 = sadd.s32 %s209, 1
      %p213 = scmp.eq.s32.totalorder %s24, 5
      %p214 = scmp.ne.s32.totalorder %s209, %s211
      %p215 = scmp.eq.s32.totalorder %s24, 0
      %p216 = por %p214, %p215
      %p217 = scmp.ne.s32.totalorder %s209, %s211
      %p218 = scmp.eq.s32.totalorder %s29, 5
      %p219 = por %p217, %p218
      %p220 = scmp.ne.s32.totalorder %s211, %s212
      %p221 = scmp.eq.s32.totalorder %s29, 0
      %p222 = por %p220, %p221
      %p223 = scmp.ne.s32.totalorder %s211, %s212
      %p224 = scmp.eq.s32.totalorder %s30, 5
      %p225 = por %p223, %p224
      %p227 = scmp.ne.s32.totalorder %s212, %s226
      %p228 = scmp.eq.s32.totalorder %s30, 0
      %p229 = por %p227, %p228
      %s231 = sadd.s32 %s230, 1
      %p234 = scmp.eq.s32.totalorder %s24, 5
      %p235 = scmp.ne.s32.totalorder %s230, %s232
      %p236 = scmp.eq.s32.totalorder %s24, 0
      %p237 = por %p235, %p236
      %p238 = scmp.ne.s32.totalorder %s230, %s232
      %p239 = scmp.eq.s32.totalorder %s29, 5
      %p240 = por %p238, %p239
      %p241 = scmp.ne.s32.totalorder %s232, %s233
      %p242 = scmp.eq.s32.totalorder %s29, 0
      %p243 = por %p241, %p242
      %p244 = scmp.ne.s32.totalorder %s232, %s233
      %p245 = scmp.eq.s32.totalorder %s30, 5
      %p246 = por %p244, %p245
      %p248 = scmp.ne.s32.totalorder %s233, %s247
      %p249 = scmp.eq.s32.totalorder %s30, 0
      %p250 = por %p248, %p249
      %s252 = sadd.s32 %s251, 1
      %p255 = scmp.eq.s32.totalorder %s24, 5
      %p256 = scmp.ne.s32.totalorder %s251, %s253
      %p257 = scmp.eq.s32.totalorder %s24, 0
      %p258 = por %p256, %p257
      %p259 = scmp.ne.s32.totalorder %s251, %s253
      %p260 = scmp.eq.s32.totalorder %s29, 5
      %p261 = por %p259, %p260
      %p262 = scmp.ne.s32.totalorder %s253, %s254
      %p263 = scmp.eq.s32.totalorder %s29, 0
      %p264 = por %p262, %p263
      %p265 = scmp.ne.s32.totalorder %s253, %s254
      %p266 = scmp.eq.s32.totalorder %s30, 5
      %p267 = por %p265, %p266
      %p269 = scmp.ne.s32.totalorder %s254, %s268
      %p270 = scmp.eq.s32.totalorder %s30, 0
      %p271 = por %p269, %p270
      %p272 = scmp.le.s32.totalorder 1, %s24
      %p273 = scmp.lt.s32.totalorder %s24, 7
      %p274 = pnand %p272, %p273
      %p275 = pneg %p274
      // Predicated region
      $region9: #{transformer_model.1} parent=5 // pred_check
        _
      $region10: #{transformer_model.1} parent=5 // pred_check_branch
        %277 = sbr.rel (%p274) target = $region12
      $region11: #{transformer_model.1} parent=5 // pred_region
        %s278 = ssub.s32 %s24, 1
        // Predicated region
        $region13: #{transformer_model.1} parent=11 // pred_check
          %p279 = pneg %p45
        $region14: #{transformer_model.1} parent=11 // pred_check_branch
          %281 = sbr.rel (%p279) target = $region16
        $region15: #{transformer_model.1} parent=11 // pred_region
          %s283 = ssub.s32 256, 256
          %284 = vsyncadd [#allocation5], %s283
          %s285 = sshll.u32 [#allocation4], 4
          %s286 = int_to_ptr.vmem [resolvable:$true] %s285
          %291 = dma.hbm_to_vmem [thread:$0]  %s0, 256, %s286, [#allocation5], 128, 128, 8
        $region16: #{transformer_model.1} parent=11 // pred_fallthru
          _
        // Predicated region
        $region17: #{transformer_model.1} parent=11 // pred_check
          %p292 = pneg %p222
        $region18: #{transformer_model.1} parent=11 // pred_check_branch
          %294 = sbr.rel (%p292) target = $region20
        $region19: #{transformer_model.1} parent=11 // pred_region
          _
        $region20: #{transformer_model.1} parent=11 // pred_fallthru
          _
        // Predicated region
        $region21: #{transformer_model.1} parent=11 // pred_check
          %p295 = pneg %p243
        $region22: #{transformer_model.1} parent=11 // pred_check_branch
          %297 = sbr.rel (%p295) target = $region24
        $region23: #{transformer_model.1} parent=11 // pred_region
          _
        $region24: #{transformer_model.1} parent=11 // pred_fallthru
          _
      $region12: #{transformer_model.1} parent=5 // pred_fallthru
        _
      %p298 = scmp.lt.s32.totalorder %s24, 6
      // Predicated region
      $region25: #{transformer_model.1} parent=5 // pred_check
        %p299 = pneg %p298
      $region26: #{transformer_model.1} parent=5 // pred_check_branch
        %301 = sbr.rel (%p299) target = $region28
      $region27: #{transformer_model.1} parent=5 // pred_region
        // Predicated region
        $region29: #{transformer_model.1} parent=27 // pred_check
          %p302 = pneg %p65
        $region30: #{transformer_model.1} parent=27 // pred_check_branch
          %304 = sbr.rel (%p302) target = $region32
        $region31: #{transformer_model.1} parent=27 // pred_region
          %s305 = sand.u32 %s24, 1
          %s306 = scalar_lea.sflag [#allocation7], %s305
          %s307 = sand.u32 %s55, 1
          %s308 = smul.addr %s307, 32
          %s309 = scalar_lea.vmem [#allocation6], %s308
          %s311 = ssub.s32 512, 512
          %312 = vsyncadd %s306, %s311
          %s313 = smul.addr %s24, 4
          %s314 = smul.addr %s313, 128
          %s315 = scalar_lea.hbm %s1, %s314
          %s316 = sshll.u32 %s309, 4
          %s317 = int_to_ptr.vmem [resolvable:$true] %s316
          %322 = dma.hbm_to_vmem [thread:$0]  %s315, 512, %s317, %s306, 128, 128, 8
        $region32: #{transformer_model.1} parent=27 // pred_fallthru
          _
        // Predicated region
        $region33: #{transformer_model.1} parent=27 // pred_check
          %p323 = pneg %p91
        $region34: #{transformer_model.1} parent=27 // pred_check_branch
          %325 = sbr.rel (%p323) target = $region36
        $region35: #{transformer_model.1} parent=27 // pred_region
          %p326 = scmp.lt.s32.totalorder %s24, 5
          %s327 = scalar_select %p326, %s24, 5
          %s328 = scalar_lea.vmem %s2, %s327
        $region36: #{transformer_model.1} parent=27 // pred_fallthru
          _
        // Predicated region
        $region37: #{transformer_model.1} parent=27 // pred_check
          %p329 = pneg %p117
        $region38: #{transformer_model.1} parent=27 // pred_check_branch
          %331 = sbr.rel (%p329) target = $region40
        $region39: #{transformer_model.1} parent=27 // pred_region
          %s332 = sand.u32 %s24, 1
          %s333 = scalar_lea.sflag [#allocation7], %s332
          %s334 = sand.u32 %s107, 1
          %s335 = smul.addr %s334, 32
          %s336 = scalar_lea.vmem [#allocation8], %s335
          %s338 = ssub.s32 512, 512
          %339 = vsyncadd %s333, %s338
          %s340 = smul.addr %s24, 4
          %s341 = smul.addr %s340, 128
          %s342 = scalar_lea.hbm %s3, %s341
          %s343 = sshll.u32 %s336, 4
          %s344 = int_to_ptr.vmem [resolvable:$true] %s343
          %349 = dma.hbm_to_vmem [thread:$0]  %s342, 512, %s344, %s333, 128, 128, 8
        $region40: #{transformer_model.1} parent=27 // pred_fallthru
          _
        // Predicated region
        $region41: #{transformer_model.1} parent=27 // pred_check
          %p350 = pneg %p143
        $region42: #{transformer_model.1} parent=27 // pred_check_branch
          %352 = sbr.rel (%p350) target = $region44
        $region43: #{transformer_model.1} parent=27 // pred_region
          %p353 = scmp.lt.s32.totalorder %s24, 5
          %s354 = scalar_select %p353, %s24, 5
          %s355 = scalar_lea.vmem %s4, %s354
        $region44: #{transformer_model.1} parent=27 // pred_fallthru
          _
        // Predicated region
        $region45: #{transformer_model.1} parent=27 // pred_check
          %p356 = pneg %p169
        $region46: #{transformer_model.1} parent=27 // pred_check_branch
          %358 = sbr.rel (%p356) target = $region48
        $region47: #{transformer_model.1} parent=27 // pred_region
          %s359 = sand.u32 %s24, 1
          %s360 = scalar_lea.sflag [#allocation10], %s359
          %s361 = sand.u32 %s159, 1
          %s362 = scalar_lea.vmem [#allocation9], %s361
          %s364 = ssub.s32 16, 16
          %365 = vsyncadd %s360, %s364
          %s366 = smul.addr %s24, 16
          %s367 = scalar_lea.hbm %s5, %s366
          %s369 = sshll.u32 %s362, 4
          %s370 = int_to_ptr.vmem [resolvable:$true] %s369
          %372 = dma.hbm_to_vmem [thread:$0]  %s367, 16, %s370, %s360
        $region48: #{transformer_model.1} parent=27 // pred_fallthru
          _
        // Predicated region
        $region49: #{transformer_model.1} parent=27 // pred_check
          %p373 = pneg %p195
        $region50: #{transformer_model.1} parent=27 // pred_check_branch
          %375 = sbr.rel (%p373) target = $region52
        $region51: #{transformer_model.1} parent=27 // pred_region
          %s376 = sand.u32 %s24, 1
          %s377 = scalar_lea.sflag [#allocation10], %s376
          %s378 = sand.u32 %s185, 1
          %s379 = scalar_lea.vmem [#allocation11], %s378
          %s381 = ssub.s32 16, 16
          %382 = vsyncadd %s377, %s381
          %s383 = smul.addr %s24, 16
          %s384 = scalar_lea.hbm %s6, %s383
          %s386 = sshll.u32 %s379, 4
          %s387 = int_to_ptr.vmem [resolvable:$true] %s386
          %389 = dma.hbm_to_vmem [thread:$0]  %s384, 16, %s387, %s377
        $region52: #{transformer_model.1} parent=27 // pred_fallthru
          _
      $region28: #{transformer_model.1} parent=5 // pred_fallthru
        _
      %p390 = scmp.le.s32.totalorder 1, %s24
      %p391 = scmp.lt.s32.totalorder %s24, 7
      %p392 = pnand %p390, %p391
      %p393 = pneg %p392
      // Predicated region
      $region53: #{transformer_model.1} parent=5 // pred_check
        _
      $region54: #{transformer_model.1} parent=5 // pred_check_branch
        %395 = sbr.rel (%p392) target = $region56
      $region55: #{transformer_model.1} parent=5 // pred_region
        %s396 = ssub.s32 %s24, 1
        // Predicated region
        $region57: #{transformer_model.1} parent=55 // pred_check
          %p397 = pneg %p45
        $region58: #{transformer_model.1} parent=55 // pred_check_branch
          %399 = sbr.rel (%p397) target = $region60
        $region59: #{transformer_model.1} parent=55 // pred_region
          %400 = dma.done [#allocation5], 256
        $region60: #{transformer_model.1} parent=55 // pred_fallthru
          _
        %s401 = sand.u32 %s29, 1
        %s402 = scalar_lea.sflag [#allocation7], %s401
        %s403 = sand.u32 %s58, 1
        %s404 = smul.addr %s403, 32
        %s405 = scalar_lea.vmem [#allocation6], %s404
        // Predicated region
        $region61: #{transformer_model.1} parent=55 // pred_check
          %p406 = pneg %p71
        $region62: #{transformer_model.1} parent=55 // pred_check_branch
          %408 = sbr.rel (%p406) target = $region64
        $region63: #{transformer_model.1} parent=55 // pred_region
          %409 = dma.done %s402, 512
        $region64: #{transformer_model.1} parent=55 // pred_fallthru
          _
        %s410 = sand.u32 %s29, 1
        %s411 = scalar_lea.sflag [#allocation7], %s410
        %s412 = sand.u32 %s110, 1
        %s413 = smul.addr %s412, 32
        %s414 = scalar_lea.vmem [#allocation8], %s413
        // Predicated region
        $region65: #{transformer_model.1} parent=55 // pred_check
          %p415 = pneg %p123
        $region66: #{transformer_model.1} parent=55 // pred_check_branch
          %417 = sbr.rel (%p415) target = $region68
        $region67: #{transformer_model.1} parent=55 // pred_region
          %418 = dma.done %s411, 512
        $region68: #{transformer_model.1} parent=55 // pred_fallthru
          _
        %s419 = sand.u32 %s29, 1
        %s420 = scalar_lea.sflag [#allocation10], %s419
        %s421 = sand.u32 %s162, 1
        %s422 = scalar_lea.vmem [#allocation9], %s421
        // Predicated region
        $region69: #{transformer_model.1} parent=55 // pred_check
          %p423 = pneg %p175
        $region70: #{transformer_model.1} parent=55 // pred_check_branch
          %425 = sbr.rel (%p423) target = $region72
        $region71: #{transformer_model.1} parent=55 // pred_region
          %426 = dma.done %s420, 16
        $region72: #{transformer_model.1} parent=55 // pred_fallthru
          _
        %s427 = sand.u32 %s29, 1
        %s428 = scalar_lea.sflag [#allocation10], %s427
        %s429 = sand.u32 %s188, 1
        %s430 = scalar_lea.vmem [#allocation11], %s429
        // Predicated region
        $region73: #{transformer_model.1} parent=55 // pred_check
          %p431 = pneg %p201
        $region74: #{transformer_model.1} parent=55 // pred_check_branch
          %433 = sbr.rel (%p431) target = $region76
        $region75: #{transformer_model.1} parent=55 // pred_region
          %434 = dma.done %s428, 16
        $region76: #{transformer_model.1} parent=55 // pred_fallthru
          _
        %p435 = pneg %p45
        %p436 = pneg %p42
        %s437 = sand.u32 %s29, 1
        %s438 = scalar_lea.sflag [#allocation7], %s437
        %s439 = sand.u32 %s58, 1
        %s440 = smul.addr %s439, 32
        %s441 = scalar_lea.vmem [#allocation6], %s440
        %p442 = pneg %p71
        %p443 = pneg %p68
        %p444 = scmp.lt.s32.totalorder %s29, 5
        %s445 = scalar_select %p444, %s29, 5
        %s446 = scalar_lea.vmem %s2, %s445
        %p447 = pneg %p97
        %p448 = pneg %p94
        %s449 = sand.u32 %s29, 1
        %s450 = scalar_lea.sflag [#allocation7], %s449
        %s451 = sand.u32 %s110, 1
        %s452 = smul.addr %s451, 32
        %s453 = scalar_lea.vmem [#allocation8], %s452
        %p454 = pneg %p123
        %p455 = pneg %p120
        %p456 = scmp.lt.s32.totalorder %s29, 5
        %s457 = scalar_select %p456, %s29, 5
        %s458 = scalar_lea.vmem %s4, %s457
        %p459 = pneg %p149
        %p460 = pneg %p146
        %s461 = sand.u32 %s29, 1
        %s462 = scalar_lea.sflag [#allocation10], %s461
        %s463 = sand.u32 %s162, 1
        %s464 = scalar_lea.vmem [#allocation9], %s463
        %p465 = pneg %p175
        %p466 = pneg %p172
        %s467 = sand.u32 %s29, 1
        %s468 = scalar_lea.sflag [#allocation10], %s467
        %s469 = sand.u32 %s188, 1
        %s470 = scalar_lea.vmem [#allocation11], %s469
        %p471 = pneg %p201
        %p472 = pneg %p198
        %p473 = pneg %p222
        %p474 = pneg %p219
        %p475 = pneg %p243
        %p476 = pneg %p240
        %p477 = pneg %p264
        %p478 = pneg %p261
        %p479 = scmp.lt.s32.totalorder %s29, 5
        %s480 = scalar_select %p479, %s29, 5
        %s481 = scalar_lea.vmem %s2, %s480
        %p482 = scmp.lt.s32.totalorder %s29, 5
        %s483 = scalar_select %p482, %s29, 5
        %s484 = scalar_lea.vmem %s4, %s483
        %p485 = scmp.eq.s32.totalorder %s29, 0
        // Predicated region
        $region77: #{transformer_model.1} parent=55 // pred_check
          %p486 = pneg %p485
        $region78: #{transformer_model.1} parent=55 // pred_check_branch
          %488 = sbr.rel (%p486) target = $region80
        $region79: #{transformer_model.1} parent=55 // pred_region
          %v489 = vld [vmem:[#allocation4] sm:$0xff]
          %v490 = vld [vmem:[#allocation4 + $0x8] sm:$0xff]
          %vm491 = vcmask 261120
          %492 = vst.msk [vmem:[#allocation2] sm:$0xff] %vm491, %v489
          %493 = vst.msk [vmem:[#allocation2 + $0x8] sm:$0xff] %vm491, %v490
        $region80: #{transformer_model.1} parent=55 // pred_fallthru
          _
        %v494 = vld [vmem:[#allocation2] sm:$0xff]
        %v495 = vld [vmem:[#allocation2 + $0x8] sm:$0xff]
        %v496 = vld [vmem:[%s405] sm:$0xff]
        %v497 = vld [vmem:[%s405 + $0x8] sm:$0xff]
        %v498 = vld [vmem:[%s405 + $0x10] sm:$0xff]
        %v499 = vld [vmem:[%s405 + $0x18] sm:$0xff]
        %v500 = vld [vmem:[%s481] sm:$0x1]
        %v502 = vlaneseq
        %v503 = vshrl.u32 %v502, 7
        %v504 = vsub.s32 0, %v503
        %v505 = vrot.slane %v500, %v504
        %vm507 = vcmask 261120
        %v509 = vsel %vm507, %v494, 0
        %v512 = vsel %vm507, %v495, 0
        %514 = vmatprep.subr.mxu0 0.0
        %515 = vmatpush1.msra.mxu0 %v496
        %516 = vmatprep.subr.mxu0 0.0
        %517 = vmatpush1.msra.mxu0 %v497
        %518 = vmatprep.subr.mxu0 0.0
        %519 = vmatpush1.msra.mxu0 %v498
        %520 = vmatprep.subr.mxu0 0.0
        %521 = vmatpush1.msra.mxu0 %v499
        %522 = vmatprep.subr.mxu0 0.0
        %523 = vmatpush1.msra.mxu0 0.0
        %524 = vmatprep.subr.mxu0 0.0
        %525 = vmatpush1.msra.mxu0 0.0
        %526 = vmatprep.subr.mxu0 0.0
        %527 = vmatpush1.msra.mxu0 0.0
        %528 = vmatprep.subr.mxu0 0.0
        %529 = vmatpush1.msra.mxu0 0.0
        %530 = vmatprep.subr.mxu0 0.0
        %531 = vmatpush1.msra.mxu0 0.0
        %532 = vmatprep.subr.mxu0 0.0
        %533 = vmatpush1.msra.mxu0 0.0
        %534 = vmatprep.subr.mxu0 0.0
        %535 = vmatpush1.msra.mxu0 0.0
        %536 = vmatprep.subr.mxu0 0.0
        %537 = vmatpush1.msra.mxu0 0.0
        %538 = vmatprep.subr.mxu0 0.0
        %539 = vmatpush1.msra.mxu0 0.0
        %540 = vmatprep.subr.mxu0 0.0
        %541 = vmatpush1.msra.mxu0 0.0
        %542 = vmatprep.subr.mxu0 0.0
        %543 = vmatpush1.msra.mxu0 0.0
        %544 = vmatprep.subr.mxu0 0.0
        %545 = vmatpush1.msra.mxu0 0.0
        %546 = vmatprep.subr.mxu0 0.0
        %547 = vmatpush1.msra.mxu0 0.0
        %548 = vmatprep.subr.mxu0 0.0
        %549 = vmatpush1.msra.mxu0 0.0
        %550 = vmatprep.subr.mxu0 0.0
        %551 = vmatpush1.msra.mxu0 0.0
        %552 = vmatprep.subr.mxu0 0.0
        %553 = vmatpush1.msra.mxu0 0.0
        %554 = vmatprep.subr.mxu0 0.0
        %555 = vmatpush1.msra.mxu0 0.0
        %556 = vmatprep.subr.mxu0 0.0
        %557 = vmatpush1.msra.mxu0 0.0
        %558 = vmatprep.subr.mxu0 0.0
        %559 = vmatpush1.msra.mxu0 0.0
        %560 = vmatprep.subr.mxu0 0.0
        %561 = vmatpush1.msra.mxu0 0.0
        %562 = vmatprep.subr.mxu0 0.0
        %563 = vmatpush1.msra.mxu0 0.0
        %564 = vmatprep.subr.mxu0 0.0
        %565 = vmatpush1.msra.mxu0 0.0
        %566 = vmatprep.subr.mxu0 0.0
        %567 = vmatpush1.msra.mxu0 0.0
        %568 = vmatprep.subr.mxu0 0.0
        %569 = vmatpush1.msra.mxu0 0.0
        %570 = vmatprep.subr.mxu0 0.0
        %571 = vmatpush1.msra.mxu0 0.0
        %572 = vmatprep.subr.mxu0 0.0
        %573 = vmatpush1.msra.mxu0 0.0
        %574 = vmatprep.subr.mxu0 0.0
        %575 = vmatpush1.msra.mxu0 0.0
        %576 = vmatprep.subr.mxu0 0.0
        %577 = vmatpush1.msra.mxu0 0.0
        %578 = vmatprep.mubr.f32.mxu0 0.0
        %579 = vmatmul.mubr.f32.gmra.mrb[0].mxu0 %v509
        %v580 = vpop.f32.mrb[0].mxu0
        %v581 = vadd.f32 %v505, %v580
        %v582 = vpop.f32.mrb[0].mxu0
        %583 = vmatprep.mubr.f32.mxu0 0.0
        %584 = vmatmul.mubr.f32.gmra.mrb[0].mxu0 %v512
        %v585 = vpop.f32.mrb[0].mxu0
        %v586 = vadd.f32 %v505, %v585
        %v587 = vpop.f32.mrb[0].mxu0
        %588 = vdwg.mxu0
        %v589 = vld [vmem:[%s414] sm:$0xff]
        %v590 = vld [vmem:[%s414 + $0x8] sm:$0xff]
        %v591 = vld [vmem:[%s414 + $0x10] sm:$0xff]
        %v592 = vld [vmem:[%s414 + $0x18] sm:$0xff]
        %594 = vrot.lane.b32.xlu0 %v581, 96
        %v595 = vpop.permute.xlu0 %594
        %vm596 = vcmask 130048
        %v597 = vsel %vm596, %v581, 0
        %v599 = vsel %vm596, %v595, 0
        %601 = vmatprep.subr.mxu0 0.0
        %602 = vmatpush1.xpose.msra.mxu0 %v599
        %603 = vmatprep.subr.mxu0 0.0
        %604 = vmatpush1.xpose.msra.mxu0 0.0
        %605 = vmatprep.subr.mxu0 0.0
        %606 = vmatpush1.xpose.msra.mxu0 0.0
        %607 = vmatprep.subr.mxu0 0.0
        %608 = vmatpush1.xpose.msra.mxu0 0.0
        %609 = vmatprep.subr.mxu0 0.0
        %610 = vmatpush1.xpose.msra.mxu0 0.0
        %611 = vmatprep.subr.mxu0 0.0
        %612 = vmatpush1.xpose.msra.mxu0 0.0
        %613 = vmatprep.subr.mxu0 0.0
        %614 = vmatpush1.xpose.msra.mxu0 0.0
        %615 = vmatprep.subr.mxu0 0.0
        %616 = vmatpush1.xpose.msra.mxu0 0.0
        %617 = vmatprep.subr.mxu0 0.0
        %618 = vmatpush1.xpose.msra.mxu0 0.0
        %619 = vmatprep.subr.mxu0 0.0
        %620 = vmatpush1.xpose.msra.mxu0 0.0
        %621 = vmatprep.subr.mxu0 0.0
        %622 = vmatpush1.xpose.msra.mxu0 0.0
        %623 = vmatprep.subr.mxu0 0.0
        %624 = vmatpush1.xpose.msra.mxu0 0.0
        %625 = vmatprep.subr.mxu0 0.0
        %626 = vmatpush1.xpose.msra.mxu0 0.0
        %627 = vmatprep.subr.mxu0 0.0
        %628 = vmatpush1.xpose.msra.mxu0 0.0
        %629 = vmatprep.subr.mxu0 0.0
        %630 = vmatpush1.xpose.msra.mxu0 0.0
        %631 = vmatprep.subr.mxu0 0.0
        %632 = vmatpush1.xpose.msra.mxu0 0.0
        %633 = vmatprep.subr.mxu0 0.0
        %634 = vmatpush1.xpose.msra.mxu0 0.0
        %635 = vmatprep.subr.mxu0 0.0
        %636 = vmatpush1.xpose.msra.mxu0 0.0
        %637 = vmatprep.subr.mxu0 0.0
        %638 = vmatpush1.xpose.msra.mxu0 0.0
        %639 = vmatprep.subr.mxu0 0.0
        %640 = vmatpush1.xpose.msra.mxu0 0.0
        %641 = vmatprep.subr.mxu0 0.0
        %642 = vmatpush1.xpose.msra.mxu0 0.0
        %643 = vmatprep.subr.mxu0 0.0
        %644 = vmatpush1.xpose.msra.mxu0 0.0
        %645 = vmatprep.subr.mxu0 0.0
        %646 = vmatpush1.xpose.msra.mxu0 0.0
        %647 = vmatprep.subr.mxu0 0.0
        %648 = vmatpush1.xpose.msra.mxu0 0.0
        %649 = vmatprep.subr.mxu0 0.0
        %650 = vmatpush1.xpose.msra.mxu0 0.0
        %651 = vmatprep.subr.mxu0 0.0
        %652 = vmatpush1.xpose.msra.mxu0 0.0
        %653 = vmatprep.subr.mxu0 0.0
        %654 = vmatpush1.xpose.msra.mxu0 0.0
        %655 = vmatprep.subr.mxu0 0.0
        %656 = vmatpush1.xpose.msra.mxu0 0.0
        %657 = vmatprep.subr.mxu0 0.0
        %658 = vmatpush1.xpose.msra.mxu0 0.0
        %659 = vmatprep.subr.mxu0 0.0
        %660 = vmatpush1.xpose.msra.mxu0 0.0
        %661 = vmatprep.subr.mxu0 0.0
        %662 = vmatpush1.xpose.msra.mxu0 0.0
        %663 = vmatprep.subr.mxu0 0.0
        %664 = vmatpush1.xpose.msra.mxu0 0.0
        %665 = vmatprep.mubr.f32.mxu0 0.0
        %666 = vmatmul.mubr.f32.gmra.mrb[0].mxu0 %v597
        %v667 = vpop.f32.mrb[0].mxu0
        %v668 = vadd.f32 0.0, %v667
        %v669 = vpop.f32.mrb[0].mxu0
        %670 = vdwg.mxu0
        %672 = vrot.lane.b32.xlu0 %v586, 96
        %v673 = vpop.permute.xlu0 %672
        %v674 = vsel %vm596, %v586, 0
        %v676 = vsel %vm596, %v673, 0
        %678 = vmatprep.subr.mxu0 0.0
        %679 = vmatpush1.xpose.msra.mxu0 %v676
        %680 = vmatprep.subr.mxu0 0.0
        %681 = vmatpush1.xpose.msra.mxu0 0.0
        %682 = vmatprep.subr.mxu0 0.0
        %683 = vmatpush1.xpose.msra.mxu0 0.0
        %684 = vmatprep.subr.mxu0 0.0
        %685 = vmatpush1.xpose.msra.mxu0 0.0
        %686 = vmatprep.subr.mxu0 0.0
        %687 = vmatpush1.xpose.msra.mxu0 0.0
        %688 = vmatprep.subr.mxu0 0.0
        %689 = vmatpush1.xpose.msra.mxu0 0.0
        %690 = vmatprep.subr.mxu0 0.0
        %691 = vmatpush1.xpose.msra.mxu0 0.0
        %692 = vmatprep.subr.mxu0 0.0
        %693 = vmatpush1.xpose.msra.mxu0 0.0
        %694 = vmatprep.subr.mxu0 0.0
        %695 = vmatpush1.xpose.msra.mxu0 0.0
        %696 = vmatprep.subr.mxu0 0.0
        %697 = vmatpush1.xpose.msra.mxu0 0.0
        %698 = vmatprep.subr.mxu0 0.0
        %699 = vmatpush1.xpose.msra.mxu0 0.0
        %700 = vmatprep.subr.mxu0 0.0
        %701 = vmatpush1.xpose.msra.mxu0 0.0
        %702 = vmatprep.subr.mxu0 0.0
        %703 = vmatpush1.xpose.msra.mxu0 0.0
        %704 = vmatprep.subr.mxu0 0.0
        %705 = vmatpush1.xpose.msra.mxu0 0.0
        %706 = vmatprep.subr.mxu0 0.0
        %707 = vmatpush1.xpose.msra.mxu0 0.0
        %708 = vmatprep.subr.mxu0 0.0
        %709 = vmatpush1.xpose.msra.mxu0 0.0
        %710 = vmatprep.subr.mxu0 0.0
        %711 = vmatpush1.xpose.msra.mxu0 0.0
        %712 = vmatprep.subr.mxu0 0.0
        %713 = vmatpush1.xpose.msra.mxu0 0.0
        %714 = vmatprep.subr.mxu0 0.0
        %715 = vmatpush1.xpose.msra.mxu0 0.0
        %716 = vmatprep.subr.mxu0 0.0
        %717 = vmatpush1.xpose.msra.mxu0 0.0
        %718 = vmatprep.subr.mxu0 0.0
        %719 = vmatpush1.xpose.msra.mxu0 0.0
        %720 = vmatprep.subr.mxu0 0.0
        %721 = vmatpush1.xpose.msra.mxu0 0.0
        %722 = vmatprep.subr.mxu0 0.0
        %723 = vmatpush1.xpose.msra.mxu0 0.0
        %724 = vmatprep.subr.mxu0 0.0
        %725 = vmatpush1.xpose.msra.mxu0 0.0
        %726 = vmatprep.subr.mxu0 0.0
        %727 = vmatpush1.xpose.msra.mxu0 0.0
        %728 = vmatprep.subr.mxu0 0.0
        %729 = vmatpush1.xpose.msra.mxu0 0.0
        %730 = vmatprep.subr.mxu0 0.0
        %731 = vmatpush1.xpose.msra.mxu0 0.0
        %732 = vmatprep.subr.mxu0 0.0
        %733 = vmatpush1.xpose.msra.mxu0 0.0
        %734 = vmatprep.subr.mxu0 0.0
        %735 = vmatpush1.xpose.msra.mxu0 0.0
        %736 = vmatprep.subr.mxu0 0.0
        %737 = vmatpush1.xpose.msra.mxu0 0.0
        %738 = vmatprep.subr.mxu0 0.0
        %739 = vmatpush1.xpose.msra.mxu0 0.0
        %740 = vmatprep.subr.mxu0 0.0
        %741 = vmatpush1.xpose.msra.mxu0 0.0
        %742 = vmatprep.mubr.f32.mxu0 0.0
        %743 = vmatmul.mubr.f32.gmra.mrb[0].mxu0 %v674
        %v744 = vpop.f32.mrb[0].mxu0
        %v745 = vadd.f32 0.0, %v744
        %v746 = vpop.f32.mrb[0].mxu0
        %747 = vdwg.mxu0
        %vm748 = vcmask 64512
        %v749 = vsel %vm748, %v668, -inf
        %750 = vmax.xlane.f32.xlu0 %v749
        %v751 = vpop.xlane.xlu0 %750
        %v752 = vsel %vm748, %v745, -inf
        %753 = vmax.xlane.f32.xlu0 %v752
        %v754 = vpop.xlane.xlu0 %753
        %v755 = vsub.f32 %v668, %v751
        %v756 = vsub.f32 %v745, %v754
        %v757 = vmul.f32 %v755, 1.442695
        %v758 = vpow.pop %v757
        %v759 = vmul.f32 %v756, 1.442695
        %v760 = vpow.pop %v759
        %v761 = vsel %vm748, %v758, 0.0
        %762 = vadd.xlane.f32.xlu0 %v761
        %v763 = vpop.xlane.xlu0 %762
        %v764 = vsel %vm748, %v760, 0.0
        %765 = vadd.xlane.f32.xlu0 %v764
        %v766 = vpop.xlane.xlu0 %765
        %v767 = vrcp.pop %v763
        %v768 = vrcp.pop %v766
        %v769 = vmul.f32 %v758, %v767
        %v770 = vmul.f32 %v760, %v768
        %771 = vrot.lane.b32.xlu0 %v581, 64
        %v772 = vpop.permute.xlu0 %771
        %v775 = vsel %vm748, %v769, 0
        %777 = vmatprep.subr.mxu0 0.0
        %778 = vmatpush1.msra.mxu0 %v772
        %779 = vmatprep.subr.mxu0 0.0
        %780 = vmatpush1.msra.mxu0 0.0
        %781 = vmatprep.subr.mxu0 0.0
        %782 = vmatpush1.msra.mxu0 0.0
        %783 = vmatprep.subr.mxu0 0.0
        %784 = vmatpush1.msra.mxu0 0.0
        %785 = vmatprep.subr.mxu0 0.0
        %786 = vmatpush1.msra.mxu0 0.0
        %787 = vmatprep.subr.mxu0 0.0
        %788 = vmatpush1.msra.mxu0 0.0
        %789 = vmatprep.subr.mxu0 0.0
        %790 = vmatpush1.msra.mxu0 0.0
        %791 = vmatprep.subr.mxu0 0.0
        %792 = vmatpush1.msra.mxu0 0.0
        %793 = vmatprep.subr.mxu0 0.0
        %794 = vmatpush1.msra.mxu0 0.0
        %795 = vmatprep.subr.mxu0 0.0
        %796 = vmatpush1.msra.mxu0 0.0
        %797 = vmatprep.subr.mxu0 0.0
        %798 = vmatpush1.msra.mxu0 0.0
        %799 = vmatprep.subr.mxu0 0.0
        %800 = vmatpush1.msra.mxu0 0.0
        %801 = vmatprep.subr.mxu0 0.0
        %802 = vmatpush1.msra.mxu0 0.0
        %803 = vmatprep.subr.mxu0 0.0
        %804 = vmatpush1.msra.mxu0 0.0
        %805 = vmatprep.subr.mxu0 0.0
        %806 = vmatpush1.msra.mxu0 0.0
        %807 = vmatprep.subr.mxu0 0.0
        %808 = vmatpush1.msra.mxu0 0.0
        %809 = vmatprep.subr.mxu0 0.0
        %810 = vmatpush1.msra.mxu0 0.0
        %811 = vmatprep.subr.mxu0 0.0
        %812 = vmatpush1.msra.mxu0 0.0
        %813 = vmatprep.subr.mxu0 0.0
        %814 = vmatpush1.msra.mxu0 0.0
        %815 = vmatprep.subr.mxu0 0.0
        %816 = vmatpush1.msra.mxu0 0.0
        %817 = vmatprep.subr.mxu0 0.0
        %818 = vmatpush1.msra.mxu0 0.0
        %819 = vmatprep.subr.mxu0 0.0
        %820 = vmatpush1.msra.mxu0 0.0
        %821 = vmatprep.subr.mxu0 0.0
        %822 = vmatpush1.msra.mxu0 0.0
        %823 = vmatprep.subr.mxu0 0.0
        %824 = vmatpush1.msra.mxu0 0.0
        %825 = vmatprep.subr.mxu0 0.0
        %826 = vmatpush1.msra.mxu0 0.0
        %827 = vmatprep.subr.mxu0 0.0
        %828 = vmatpush1.msra.mxu0 0.0
        %829 = vmatprep.subr.mxu0 0.0
        %830 = vmatpush1.msra.mxu0 0.0
        %831 = vmatprep.subr.mxu0 0.0
        %832 = vmatpush1.msra.mxu0 0.0
        %833 = vmatprep.subr.mxu0 0.0
        %834 = vmatpush1.msra.mxu0 0.0
        %835 = vmatprep.subr.mxu0 0.0
        %836 = vmatpush1.msra.mxu0 0.0
        %837 = vmatprep.subr.mxu0 0.0
        %838 = vmatpush1.msra.mxu0 0.0
        %839 = vmatprep.subr.mxu0 0.0
        %840 = vmatpush1.msra.mxu0 0.0
        %841 = vmatprep.mubr.f32.mxu0 0.0
        %842 = vmatmul.mubr.f32.gmra.mrb[0].mxu0 %v775
        %v843 = vpop.f32.mrb[0].mxu0
        %v844 = vadd.f32 0.0, %v843
        %v845 = vpop.f32.mrb[0].mxu0
        %846 = vdwg.mxu0
        %847 = vrot.lane.b32.xlu0 %v586, 64
        %v848 = vpop.permute.xlu0 %847
        %v851 = vsel %vm748, %v770, 0
        %853 = vmatprep.subr.mxu0 0.0
        %854 = vmatpush1.msra.mxu0 %v848
        %855 = vmatprep.subr.mxu0 0.0
        %856 = vmatpush1.msra.mxu0 0.0
        %857 = vmatprep.subr.mxu0 0.0
        %858 = vmatpush1.msra.mxu0 0.0
        %859 = vmatprep.subr.mxu0 0.0
        %860 = vmatpush1.msra.mxu0 0.0
        %861 = vmatprep.subr.mxu0 0.0
        %862 = vmatpush1.msra.mxu0 0.0
        %863 = vmatprep.subr.mxu0 0.0
        %864 = vmatpush1.msra.mxu0 0.0
        %865 = vmatprep.subr.mxu0 0.0
        %866 = vmatpush1.msra.mxu0 0.0
        %867 = vmatprep.subr.mxu0 0.0
        %868 = vmatpush1.msra.mxu0 0.0
        %869 = vmatprep.subr.mxu0 0.0
        %870 = vmatpush1.msra.mxu0 0.0
        %871 = vmatprep.subr.mxu0 0.0
        %872 = vmatpush1.msra.mxu0 0.0
        %873 = vmatprep.subr.mxu0 0.0
        %874 = vmatpush1.msra.mxu0 0.0
        %875 = vmatprep.subr.mxu0 0.0
        %876 = vmatpush1.msra.mxu0 0.0
        %877 = vmatprep.subr.mxu0 0.0
        %878 = vmatpush1.msra.mxu0 0.0
        %879 = vmatprep.subr.mxu0 0.0
        %880 = vmatpush1.msra.mxu0 0.0
        %881 = vmatprep.subr.mxu0 0.0
        %882 = vmatpush1.msra.mxu0 0.0
        %883 = vmatprep.subr.mxu0 0.0
        %884 = vmatpush1.msra.mxu0 0.0
        %885 = vmatprep.subr.mxu0 0.0
        %886 = vmatpush1.msra.mxu0 0.0
        %887 = vmatprep.subr.mxu0 0.0
        %888 = vmatpush1.msra.mxu0 0.0
        %889 = vmatprep.subr.mxu0 0.0
        %890 = vmatpush1.msra.mxu0 0.0
        %891 = vmatprep.subr.mxu0 0.0
        %892 = vmatpush1.msra.mxu0 0.0
        %893 = vmatprep.subr.mxu0 0.0
        %894 = vmatpush1.msra.mxu0 0.0
        %895 = vmatprep.subr.mxu0 0.0
        %896 = vmatpush1.msra.mxu0 0.0
        %897 = vmatprep.subr.mxu0 0.0
        %898 = vmatpush1.msra.mxu0 0.0
        %899 = vmatprep.subr.mxu0 0.0
        %900 = vmatpush1.msra.mxu0 0.0
        %901 = vmatprep.subr.mxu0 0.0
        %902 = vmatpush1.msra.mxu0 0.0
        %903 = vmatprep.subr.mxu0 0.0
        %904 = vmatpush1.msra.mxu0 0.0
        %905 = vmatprep.subr.mxu0 0.0
        %906 = vmatpush1.msra.mxu0 0.0
        %907 = vmatprep.subr.mxu0 0.0
        %908 = vmatpush1.msra.mxu0 0.0
        %909 = vmatprep.subr.mxu0 0.0
        %910 = vmatpush1.msra.mxu0 0.0
        %911 = vmatprep.subr.mxu0 0.0
        %912 = vmatpush1.msra.mxu0 0.0
        %913 = vmatprep.subr.mxu0 0.0
        %914 = vmatpush1.msra.mxu0 0.0
        %915 = vmatprep.subr.mxu0 0.0
        %916 = vmatpush1.msra.mxu0 0.0
        %917 = vmatprep.mubr.f32.mxu0 0.0
        %918 = vmatmul.mubr.f32.gmra.mrb[0].mxu0 %v851
        %v919 = vpop.f32.mrb[0].mxu0
        %v920 = vadd.f32 0.0, %v919
        %v921 = vpop.f32.mrb[0].mxu0
        %922 = vdwg.mxu0
        %923 = vrot.lane.b32.xlu0 %v581, 112
        %v924 = vpop.permute.xlu0 %923
        %925 = vrot.lane.b32.xlu0 %v581, 80
        %v926 = vpop.permute.xlu0 %925
        %v927 = vsel %vm596, %v924, 0
        %v929 = vsel %vm596, %v926, 0
        %931 = vmatprep.subr.mxu0 0.0
        %932 = vmatpush1.xpose.msra.mxu0 %v929
        %933 = vmatprep.subr.mxu0 0.0
        %934 = vmatpush1.xpose.msra.mxu0 0.0
        %935 = vmatprep.subr.mxu0 0.0
        %936 = vmatpush1.xpose.msra.mxu0 0.0
        %937 = vmatprep.subr.mxu0 0.0
        %938 = vmatpush1.xpose.msra.mxu0 0.0
        %939 = vmatprep.subr.mxu0 0.0
        %940 = vmatpush1.xpose.msra.mxu0 0.0
        %941 = vmatprep.subr.mxu0 0.0
        %942 = vmatpush1.xpose.msra.mxu0 0.0
        %943 = vmatprep.subr.mxu0 0.0
        %944 = vmatpush1.xpose.msra.mxu0 0.0
        %945 = vmatprep.subr.mxu0 0.0
        %946 = vmatpush1.xpose.msra.mxu0 0.0
        %947 = vmatprep.subr.mxu0 0.0
        %948 = vmatpush1.xpose.msra.mxu0 0.0
        %949 = vmatprep.subr.mxu0 0.0
        %950 = vmatpush1.xpose.msra.mxu0 0.0
        %951 = vmatprep.subr.mxu0 0.0
        %952 = vmatpush1.xpose.msra.mxu0 0.0
        %953 = vmatprep.subr.mxu0 0.0
        %954 = vmatpush1.xpose.msra.mxu0 0.0
        %955 = vmatprep.subr.mxu0 0.0
        %956 = vmatpush1.xpose.msra.mxu0 0.0
        %957 = vmatprep.subr.mxu0 0.0
        %958 = vmatpush1.xpose.msra.mxu0 0.0
        %959 = vmatprep.subr.mxu0 0.0
        %960 = vmatpush1.xpose.msra.mxu0 0.0
        %961 = vmatprep.subr.mxu0 0.0
        %962 = vmatpush1.xpose.msra.mxu0 0.0
        %963 = vmatprep.subr.mxu0 0.0
        %964 = vmatpush1.xpose.msra.mxu0 0.0
        %965 = vmatprep.subr.mxu0 0.0
        %966 = vmatpush1.xpose.msra.mxu0 0.0
        %967 = vmatprep.subr.mxu0 0.0
        %968 = vmatpush1.xpose.msra.mxu0 0.0
        %969 = vmatprep.subr.mxu0 0.0
        %970 = vmatpush1.xpose.msra.mxu0 0.0
        %971 = vmatprep.subr.mxu0 0.0
        %972 = vmatpush1.xpose.msra.mxu0 0.0
        %973 = vmatprep.subr.mxu0 0.0
        %974 = vmatpush1.xpose.msra.mxu0 0.0
        %975 = vmatprep.subr.mxu0 0.0
        %976 = vmatpush1.xpose.msra.mxu0 0.0
        %977 = vmatprep.subr.mxu0 0.0
        %978 = vmatpush1.xpose.msra.mxu0 0.0
        %979 = vmatprep.subr.mxu0 0.0
        %980 = vmatpush1.xpose.msra.mxu0 0.0
        %981 = vmatprep.subr.mxu0 0.0
        %982 = vmatpush1.xpose.msra.mxu0 0.0
        %983 = vmatprep.subr.mxu0 0.0
        %984 = vmatpush1.xpose.msra.mxu0 0.0
        %985 = vmatprep.subr.mxu0 0.0
        %986 = vmatpush1.xpose.msra.mxu0 0.0
        %987 = vmatprep.subr.mxu0 0.0
        %988 = vmatpush1.xpose.msra.mxu0 0.0
        %989 = vmatprep.subr.mxu0 0.0
        %990 = vmatpush1.xpose.msra.mxu0 0.0
        %991 = vmatprep.subr.mxu0 0.0
        %992 = vmatpush1.xpose.msra.mxu0 0.0
        %993 = vmatprep.subr.mxu0 0.0
        %994 = vmatpush1.xpose.msra.mxu0 0.0
        %995 = vmatprep.mubr.f32.mxu0 0.0
        %996 = vmatmul.mubr.f32.gmra.mrb[0].mxu0 %v927
        %v997 = vpop.f32.mrb[0].mxu0
        %v998 = vadd.f32 0.0, %v997
        %v999 = vpop.f32.mrb[0].mxu0
        %1000 = vdwg.mxu0
        %1001 = vrot.lane.b32.xlu0 %v586, 112
        %v1002 = vpop.permute.xlu0 %1001
        %1003 = vrot.lane.b32.xlu0 %v586, 80
        %v1004 = vpop.permute.xlu0 %1003
        %v1005 = vsel %vm596, %v1002, 0
        %v1007 = vsel %vm596, %v1004, 0
        %1009 = vmatprep.subr.mxu0 0.0
        %1010 = vmatpush1.xpose.msra.mxu0 %v1007
        %1011 = vmatprep.subr.mxu0 0.0
        %1012 = vmatpush1.xpose.msra.mxu0 0.0
        %1013 = vmatprep.subr.mxu0 0.0
        %1014 = vmatpush1.xpose.msra.mxu0 0.0
        %1015 = vmatprep.subr.mxu0 0.0
        %1016 = vmatpush1.xpose.msra.mxu0 0.0
        %1017 = vmatprep.subr.mxu0 0.0
        %1018 = vmatpush1.xpose.msra.mxu0 0.0
        %1019 = vmatprep.subr.mxu0 0.0
        %1020 = vmatpush1.xpose.msra.mxu0 0.0
        %1021 = vmatprep.subr.mxu0 0.0
        %1022 = vmatpush1.xpose.msra.mxu0 0.0
        %1023 = vmatprep.subr.mxu0 0.0
        %1024 = vmatpush1.xpose.msra.mxu0 0.0
        %1025 = vmatprep.subr.mxu0 0.0
        %1026 = vmatpush1.xpose.msra.mxu0 0.0
        %1027 = vmatprep.subr.mxu0 0.0
        %1028 = vmatpush1.xpose.msra.mxu0 0.0
        %1029 = vmatprep.subr.mxu0 0.0
        %1030 = vmatpush1.xpose.msra.mxu0 0.0
        %1031 = vmatprep.subr.mxu0 0.0
        %1032 = vmatpush1.xpose.msra.mxu0 0.0
        %1033 = vmatprep.subr.mxu0 0.0
        %1034 = vmatpush1.xpose.msra.mxu0 0.0
        %1035 = vmatprep.subr.mxu0 0.0
        %1036 = vmatpush1.xpose.msra.mxu0 0.0
        %1037 = vmatprep.subr.mxu0 0.0
        %1038 = vmatpush1.xpose.msra.mxu0 0.0
        %1039 = vmatprep.subr.mxu0 0.0
        %1040 = vmatpush1.xpose.msra.mxu0 0.0
        %1041 = vmatprep.subr.mxu0 0.0
        %1042 = vmatpush1.xpose.msra.mxu0 0.0
        %1043 = vmatprep.subr.mxu0 0.0
        %1044 = vmatpush1.xpose.msra.mxu0 0.0
        %1045 = vmatprep.subr.mxu0 0.0
        %1046 = vmatpush1.xpose.msra.mxu0 0.0
        %1047 = vmatprep.subr.mxu0 0.0
        %1048 = vmatpush1.xpose.msra.mxu0 0.0
        %1049 = vmatprep.subr.mxu0 0.0
        %1050 = vmatpush1.xpose.msra.mxu0 0.0
        %1051 = vmatprep.subr.mxu0 0.0
        %1052 = vmatpush1.xpose.msra.mxu0 0.0
        %1053 = vmatprep.subr.mxu0 0.0
        %1054 = vmatpush1.xpose.msra.mxu0 0.0
        %1055 = vmatprep.subr.mxu0 0.0
        %1056 = vmatpush1.xpose.msra.mxu0 0.0
        %1057 = vmatprep.subr.mxu0 0.0
        %1058 = vmatpush1.xpose.msra.mxu0 0.0
        %1059 = vmatprep.subr.mxu0 0.0
        %1060 = vmatpush1.xpose.msra.mxu0 0.0
        %1061 = vmatprep.subr.mxu0 0.0
        %1062 = vmatpush1.xpose.msra.mxu0 0.0
        %1063 = vmatprep.subr.mxu0 0.0
        %1064 = vmatpush1.xpose.msra.mxu0 0.0
        %1065 = vmatprep.subr.mxu0 0.0
        %1066 = vmatpush1.xpose.msra.mxu0 0.0
        %1067 = vmatprep.subr.mxu0 0.0
        %1068 = vmatpush1.xpose.msra.mxu0 0.0
        %1069 = vmatprep.subr.mxu0 0.0
        %1070 = vmatpush1.xpose.msra.mxu0 0.0
        %1071 = vmatprep.subr.mxu0 0.0
        %1072 = vmatpush1.xpose.msra.mxu0 0.0
        %1073 = vmatprep.mubr.f32.mxu0 0.0
        %1074 = vmatmul.mubr.f32.gmra.mrb[0].mxu0 %v1005
        %v1075 = vpop.f32.mrb[0].mxu0
        %v1076 = vadd.f32 0.0, %v1075
        %v1077 = vpop.f32.mrb[0].mxu0
        %1078 = vdwg.mxu0
        %v1079 = vsel %vm748, %v998, -inf
        %1080 = vmax.xlane.f32.xlu0 %v1079
        %v1081 = vpop.xlane.xlu0 %1080
        %v1082 = vsel %vm748, %v1076, -inf
        %1083 = vmax.xlane.f32.xlu0 %v1082
        %v1084 = vpop.xlane.xlu0 %1083
        %v1085 = vsub.f32 %v998, %v1081
        %v1086 = vsub.f32 %v1076, %v1084
        %v1087 = vmul.f32 %v1085, 1.442695
        %v1088 = vpow.pop %v1087
        %v1089 = vmul.f32 %v1086, 1.442695
        %v1090 = vpow.pop %v1089
        %v1091 = vsel %vm748, %v1088, 0.0
        %1092 = vadd.xlane.f32.xlu0 %v1091
        %v1093 = vpop.xlane.xlu0 %1092
        %v1094 = vsel %vm748, %v1090, 0.0
        %1095 = vadd.xlane.f32.xlu0 %v1094
        %v1096 = vpop.xlane.xlu0 %1095
        %v1097 = vrcp.pop %v1093
        %v1098 = vrcp.pop %v1096
        %v1099 = vmul.f32 %v1088, %v1097
        %v1100 = vmul.f32 %v1090, %v1098
        %1101 = vrot.lane.b32.xlu0 %v581, 48
        %v1102 = vpop.permute.xlu0 %1101
        %v1105 = vsel %vm748, %v1099, 0
        %1107 = vmatprep.subr.mxu0 0.0
        %1108 = vmatpush1.msra.mxu0 %v1102
        %1109 = vmatprep.subr.mxu0 0.0
        %1110 = vmatpush1.msra.mxu0 0.0
        %1111 = vmatprep.subr.mxu0 0.0
        %1112 = vmatpush1.msra.mxu0 0.0
        %1113 = vmatprep.subr.mxu0 0.0
        %1114 = vmatpush1.msra.mxu0 0.0
        %1115 = vmatprep.subr.mxu0 0.0
        %1116 = vmatpush1.msra.mxu0 0.0
        %1117 = vmatprep.subr.mxu0 0.0
        %1118 = vmatpush1.msra.mxu0 0.0
        %1119 = vmatprep.subr.mxu0 0.0
        %1120 = vmatpush1.msra.mxu0 0.0
        %1121 = vmatprep.subr.mxu0 0.0
        %1122 = vmatpush1.msra.mxu0 0.0
        %1123 = vmatprep.subr.mxu0 0.0
        %1124 = vmatpush1.msra.mxu0 0.0
        %1125 = vmatprep.subr.mxu0 0.0
        %1126 = vmatpush1.msra.mxu0 0.0
        %1127 = vmatprep.subr.mxu0 0.0
        %1128 = vmatpush1.msra.mxu0 0.0
        %1129 = vmatprep.subr.mxu0 0.0
        %1130 = vmatpush1.msra.mxu0 0.0
        %1131 = vmatprep.subr.mxu0 0.0
        %1132 = vmatpush1.msra.mxu0 0.0
        %1133 = vmatprep.subr.mxu0 0.0
        %1134 = vmatpush1.msra.mxu0 0.0
        %1135 = vmatprep.subr.mxu0 0.0
        %1136 = vmatpush1.msra.mxu0 0.0
        %1137 = vmatprep.subr.mxu0 0.0
        %1138 = vmatpush1.msra.mxu0 0.0
        %1139 = vmatprep.subr.mxu0 0.0
        %1140 = vmatpush1.msra.mxu0 0.0
        %1141 = vmatprep.subr.mxu0 0.0
        %1142 = vmatpush1.msra.mxu0 0.0
        %1143 = vmatprep.subr.mxu0 0.0
        %1144 = vmatpush1.msra.mxu0 0.0
        %1145 = vmatprep.subr.mxu0 0.0
        %1146 = vmatpush1.msra.mxu0 0.0
        %1147 = vmatprep.subr.mxu0 0.0
        %1148 = vmatpush1.msra.mxu0 0.0
        %1149 = vmatprep.subr.mxu0 0.0
        %1150 = vmatpush1.msra.mxu0 0.0
        %1151 = vmatprep.subr.mxu0 0.0
        %1152 = vmatpush1.msra.mxu0 0.0
        %1153 = vmatprep.subr.mxu0 0.0
        %1154 = vmatpush1.msra.mxu0 0.0
        %1155 = vmatprep.subr.mxu0 0.0
        %1156 = vmatpush1.msra.mxu0 0.0
        %1157 = vmatprep.subr.mxu0 0.0
        %1158 = vmatpush1.msra.mxu0 0.0
        %1159 = vmatprep.subr.mxu0 0.0
        %1160 = vmatpush1.msra.mxu0 0.0
        %1161 = vmatprep.subr.mxu0 0.0
        %1162 = vmatpush1.msra.mxu0 0.0
        %1163 = vmatprep.subr.mxu0 0.0
        %1164 = vmatpush1.msra.mxu0 0.0
        %1165 = vmatprep.subr.mxu0 0.0
        %1166 = vmatpush1.msra.mxu0 0.0
        %1167 = vmatprep.subr.mxu0 0.0
        %1168 = vmatpush1.msra.mxu0 0.0
        %1169 = vmatprep.subr.mxu0 0.0
        %1170 = vmatpush1.msra.mxu0 0.0
        %1171 = vmatprep.mubr.f32.mxu0 0.0
        %1172 = vmatmul.mubr.f32.gmra.mrb[0].mxu0 %v1105
        %v1173 = vpop.f32.mrb[0].mxu0
        %v1174 = vadd.f32 0.0, %v1173
        %v1175 = vpop.f32.mrb[0].mxu0
        %1176 = vdwg.mxu0
        %1177 = vrot.lane.b32.xlu0 %v586, 48
        %v1178 = vpop.permute.xlu0 %1177
        %v1181 = vsel %vm748, %v1100, 0
        %1183 = vmatprep.subr.mxu0 0.0
        %1184 = vmatpush1.msra.mxu0 %v1178
        %1185 = vmatprep.subr.mxu0 0.0
        %1186 = vmatpush1.msra.mxu0 0.0
        %1187 = vmatprep.subr.mxu0 0.0
        %1188 = vmatpush1.msra.mxu0 0.0
        %1189 = vmatprep.subr.mxu0 0.0
        %1190 = vmatpush1.msra.mxu0 0.0
        %1191 = vmatprep.subr.mxu0 0.0
        %1192 = vmatpush1.msra.mxu0 0.0
        %1193 = vmatprep.subr.mxu0 0.0
        %1194 = vmatpush1.msra.mxu0 0.0
        %1195 = vmatprep.subr.mxu0 0.0
        %1196 = vmatpush1.msra.mxu0 0.0
        %1197 = vmatprep.subr.mxu0 0.0
        %1198 = vmatpush1.msra.mxu0 0.0
        %1199 = vmatprep.subr.mxu0 0.0
        %1200 = vmatpush1.msra.mxu0 0.0
        %1201 = vmatprep.subr.mxu0 0.0
        %1202 = vmatpush1.msra.mxu0 0.0
        %1203 = vmatprep.subr.mxu0 0.0
        %1204 = vmatpush1.msra.mxu0 0.0
        %1205 = vmatprep.subr.mxu0 0.0
        %1206 = vmatpush1.msra.mxu0 0.0
        %1207 = vmatprep.subr.mxu0 0.0
        %1208 = vmatpush1.msra.mxu0 0.0
        %1209 = vmatprep.subr.mxu0 0.0
        %1210 = vmatpush1.msra.mxu0 0.0
        %1211 = vmatprep.subr.mxu0 0.0
        %1212 = vmatpush1.msra.mxu0 0.0
        %1213 = vmatprep.subr.mxu0 0.0
        %1214 = vmatpush1.msra.mxu0 0.0
        %1215 = vmatprep.subr.mxu0 0.0
        %1216 = vmatpush1.msra.mxu0 0.0
        %1217 = vmatprep.subr.mxu0 0.0
        %1218 = vmatpush1.msra.mxu0 0.0
        %1219 = vmatprep.subr.mxu0 0.0
        %1220 = vmatpush1.msra.mxu0 0.0
        %1221 = vmatprep.subr.mxu0 0.0
        %1222 = vmatpush1.msra.mxu0 0.0
        %1223 = vmatprep.subr.mxu0 0.0
        %1224 = vmatpush1.msra.mxu0 0.0
        %1225 = vmatprep.subr.mxu0 0.0
        %1226 = vmatpush1.msra.mxu0 0.0
        %1227 = vmatprep.subr.mxu0 0.0
        %1228 = vmatpush1.msra.mxu0 0.0
        %1229 = vmatprep.subr.mxu0 0.0
        %1230 = vmatpush1.msra.mxu0 0.0
        %1231 = vmatprep.subr.mxu0 0.0
        %1232 = vmatpush1.msra.mxu0 0.0
        %1233 = vmatprep.subr.mxu0 0.0
        %1234 = vmatpush1.msra.mxu0 0.0
        %1235 = vmatprep.subr.mxu0 0.0
        %1236 = vmatpush1.msra.mxu0 0.0
        %1237 = vmatprep.subr.mxu0 0.0
        %1238 = vmatpush1.msra.mxu0 0.0
        %1239 = vmatprep.subr.mxu0 0.0
        %1240 = vmatpush1.msra.mxu0 0.0
        %1241 = vmatprep.subr.mxu0 0.0
        %1242 = vmatpush1.msra.mxu0 0.0
        %1243 = vmatprep.subr.mxu0 0.0
        %1244 = vmatpush1.msra.mxu0 0.0
        %1245 = vmatprep.subr.mxu0 0.0
        %1246 = vmatpush1.msra.mxu0 0.0
        %1247 = vmatprep.mubr.f32.mxu0 0.0
        %1248 = vmatmul.mubr.f32.gmra.mrb[0].mxu0 %v1181
        %v1249 = vpop.f32.mrb[0].mxu0
        %v1250 = vadd.f32 0.0, %v1249
        %v1251 = vpop.f32.mrb[0].mxu0
        %1252 = vdwg.mxu0
        %v1254 = vsel %vm596, %v1174, 0
        %v1257 = vsel %vm596, %v1250, 0
        %1259 = vmatprep.subr.mxu0 0.0
        %1260 = vmatpush1.msra.mxu0 %v591
        %1261 = vmatprep.subr.mxu0 0.0
        %1262 = vmatpush1.msra.mxu0 %v592
        %1263 = vmatprep.subr.mxu0 0.0
        %1264 = vmatpush1.msra.mxu0 0.0
        %1265 = vmatprep.subr.mxu0 0.0
        %1266 = vmatpush1.msra.mxu0 0.0
        %1267 = vmatprep.subr.mxu0 0.0
        %1268 = vmatpush1.msra.mxu0 0.0
        %1269 = vmatprep.subr.mxu0 0.0
        %1270 = vmatpush1.msra.mxu0 0.0
        %1271 = vmatprep.subr.mxu0 0.0
        %1272 = vmatpush1.msra.mxu0 0.0
        %1273 = vmatprep.subr.mxu0 0.0
        %1274 = vmatpush1.msra.mxu0 0.0
        %1275 = vmatprep.subr.mxu0 0.0
        %1276 = vmatpush1.msra.mxu0 0.0
        %1277 = vmatprep.subr.mxu0 0.0
        %1278 = vmatpush1.msra.mxu0 0.0
        %1279 = vmatprep.subr.mxu0 0.0
        %1280 = vmatpush1.msra.mxu0 0.0
        %1281 = vmatprep.subr.mxu0 0.0
        %1282 = vmatpush1.msra.mxu0 0.0
        %1283 = vmatprep.subr.mxu0 0.0
        %1284 = vmatpush1.msra.mxu0 0.0
        %1285 = vmatprep.subr.mxu0 0.0
        %1286 = vmatpush1.msra.mxu0 0.0
        %1287 = vmatprep.subr.mxu0 0.0
        %1288 = vmatpush1.msra.mxu0 0.0
        %1289 = vmatprep.subr.mxu0 0.0
        %1290 = vmatpush1.msra.mxu0 0.0
        %1291 = vmatprep.subr.mxu0 0.0
        %1292 = vmatpush1.msra.mxu0 0.0
        %1293 = vmatprep.subr.mxu0 0.0
        %1294 = vmatpush1.msra.mxu0 0.0
        %1295 = vmatprep.subr.mxu0 0.0
        %1296 = vmatpush1.msra.mxu0 0.0
        %1297 = vmatprep.subr.mxu0 0.0
        %1298 = vmatpush1.msra.mxu0 0.0
        %1299 = vmatprep.subr.mxu0 0.0
        %1300 = vmatpush1.msra.mxu0 0.0
        %1301 = vmatprep.subr.mxu0 0.0
        %1302 = vmatpush1.msra.mxu0 0.0
        %1303 = vmatprep.subr.mxu0 0.0
        %1304 = vmatpush1.msra.mxu0 0.0
        %1305 = vmatprep.subr.mxu0 0.0
        %1306 = vmatpush1.msra.mxu0 0.0
        %1307 = vmatprep.subr.mxu0 0.0
        %1308 = vmatpush1.msra.mxu0 0.0
        %1309 = vmatprep.subr.mxu0 0.0
        %1310 = vmatpush1.msra.mxu0 0.0
        %1311 = vmatprep.subr.mxu0 0.0
        %1312 = vmatpush1.msra.mxu0 0.0
        %1313 = vmatprep.subr.mxu0 0.0
        %1314 = vmatpush1.msra.mxu0 0.0
        %1315 = vmatprep.subr.mxu0 0.0
        %1316 = vmatpush1.msra.mxu0 0.0
        %1317 = vmatprep.subr.mxu0 0.0
        %1318 = vmatpush1.msra.mxu0 0.0
        %1319 = vmatprep.subr.mxu0 0.0
        %1320 = vmatpush1.msra.mxu0 0.0
        %1321 = vmatprep.subr.mxu0 0.0
        %1322 = vmatpush1.msra.mxu0 0.0
        %1323 = vmatprep.mubr.f32.mxu0 0.0
        %1324 = vmatmul.mubr.f32.gmra.mrb[0].mxu0 %v1254
        %v1325 = vpop.f32.mrb[0].mxu0
        %v1326 = vadd.f32 0.0, %v1325
        %v1327 = vpop.f32.mrb[0].mxu0
        %1328 = vmatprep.mubr.f32.mxu0 0.0
        %1329 = vmatmul.mubr.f32.gmra.mrb[0].mxu0 %v1257
        %v1330 = vpop.f32.mrb[0].mxu0
        %v1331 = vadd.f32 0.0, %v1330
        %v1332 = vpop.f32.mrb[0].mxu0
        %1333 = vdwg.mxu0
        %v1335 = vsel %vm596, %v844, 0
        %v1338 = vsel %vm596, %v920, 0
        %1340 = vmatprep.subr.mxu0 0.0
        %1341 = vmatpush1.msra.mxu0 %v589
        %1342 = vmatprep.subr.mxu0 0.0
        %1343 = vmatpush1.msra.mxu0 %v590
        %1344 = vmatprep.subr.mxu0 0.0
        %1345 = vmatpush1.msra.mxu0 0.0
        %1346 = vmatprep.subr.mxu0 0.0
        %1347 = vmatpush1.msra.mxu0 0.0
        %1348 = vmatprep.subr.mxu0 0.0
        %1349 = vmatpush1.msra.mxu0 0.0
        %1350 = vmatprep.subr.mxu0 0.0
        %1351 = vmatpush1.msra.mxu0 0.0
        %1352 = vmatprep.subr.mxu0 0.0
        %1353 = vmatpush1.msra.mxu0 0.0
        %1354 = vmatprep.subr.mxu0 0.0
        %1355 = vmatpush1.msra.mxu0 0.0
        %1356 = vmatprep.subr.mxu0 0.0
        %1357 = vmatpush1.msra.mxu0 0.0
        %1358 = vmatprep.subr.mxu0 0.0
        %1359 = vmatpush1.msra.mxu0 0.0
        %1360 = vmatprep.subr.mxu0 0.0
        %1361 = vmatpush1.msra.mxu0 0.0
        %1362 = vmatprep.subr.mxu0 0.0
        %1363 = vmatpush1.msra.mxu0 0.0
        %1364 = vmatprep.subr.mxu0 0.0
        %1365 = vmatpush1.msra.mxu0 0.0
        %1366 = vmatprep.subr.mxu0 0.0
        %1367 = vmatpush1.msra.mxu0 0.0
        %1368 = vmatprep.subr.mxu0 0.0
        %1369 = vmatpush1.msra.mxu0 0.0
        %1370 = vmatprep.subr.mxu0 0.0
        %1371 = vmatpush1.msra.mxu0 0.0
        %1372 = vmatprep.subr.mxu0 0.0
        %1373 = vmatpush1.msra.mxu0 0.0
        %1374 = vmatprep.subr.mxu0 0.0
        %1375 = vmatpush1.msra.mxu0 0.0
        %1376 = vmatprep.subr.mxu0 0.0
        %1377 = vmatpush1.msra.mxu0 0.0
        %1378 = vmatprep.subr.mxu0 0.0
        %1379 = vmatpush1.msra.mxu0 0.0
        %1380 = vmatprep.subr.mxu0 0.0
        %1381 = vmatpush1.msra.mxu0 0.0
        %1382 = vmatprep.subr.mxu0 0.0
        %1383 = vmatpush1.msra.mxu0 0.0
        %1384 = vmatprep.subr.mxu0 0.0
        %1385 = vmatpush1.msra.mxu0 0.0
        %1386 = vmatprep.subr.mxu0 0.0
        %1387 = vmatpush1.msra.mxu0 0.0
        %1388 = vmatprep.subr.mxu0 0.0
        %1389 = vmatpush1.msra.mxu0 0.0
        %1390 = vmatprep.subr.mxu0 0.0
        %1391 = vmatpush1.msra.mxu0 0.0
        %1392 = vmatprep.subr.mxu0 0.0
        %1393 = vmatpush1.msra.mxu0 0.0
        %1394 = vmatprep.subr.mxu0 0.0
        %1395 = vmatpush1.msra.mxu0 0.0
        %1396 = vmatprep.subr.mxu0 0.0
        %1397 = vmatpush1.msra.mxu0 0.0
        %1398 = vmatprep.subr.mxu0 0.0
        %1399 = vmatpush1.msra.mxu0 0.0
        %1400 = vmatprep.subr.mxu0 0.0
        %1401 = vmatpush1.msra.mxu0 0.0
        %1402 = vmatprep.subr.mxu0 0.0
        %1403 = vmatpush1.msra.mxu0 0.0
        %1404 = vmatprep.mubr.f32.mxu0 0.0
        %1405 = vmatmul.mubr.f32.gmra.mrb[0].mxu0 %v1335
        %v1406 = vpop.f32.mrb[0].mxu0
        %v1407 = vadd.f32 %v1326, %v1406
        %v1408 = vpop.f32.mrb[0].mxu0
        %1409 = vmatprep.mubr.f32.mxu0 0.0
        %1410 = vmatmul.mubr.f32.gmra.mrb[0].mxu0 %v1338
        %v1411 = vpop.f32.mrb[0].mxu0
        %v1412 = vadd.f32 %v1331, %v1411
        %v1413 = vpop.f32.mrb[0].mxu0
        %1414 = vdwg.mxu0
        %v1415 = vld [vmem:[%s484] sm:$0x1]
        %v1417 = vlaneseq
        %v1418 = vshrl.u32 %v1417, 7
        %v1419 = vsub.s32 0, %v1418
        %v1420 = vrot.slane %v1415, %v1419
        %v1422 = vadd.f32 %v1407, %v1420
        %v1423 = vadd.f32 %v1412, %v1420
        %v1424 = vadd.f32 %v494, %v1422
        %v1425 = vadd.f32 %v495, %v1423
        %v1426 = vsel %vm507, %v1424, 0.0
        %1427 = vadd.xlane.f32.xlu0 %v1426
        %v1428 = vpop.xlane.xlu0 %1427
        %v1429 = vsel %vm507, %v1425, 0.0
        %1430 = vadd.xlane.f32.xlu0 %v1429
        %v1431 = vpop.xlane.xlu0 %1430
        %v1432 = vrcp.pop 32.0
        %v1433 = vmul.f32 %v1428, %v1432
        %v1434 = vmul.f32 %v1431, %v1432
        %v1435 = vsub.f32 %v1424, %v1433
        %v1436 = vsub.f32 %v1425, %v1434
        %v1437 = vmul.f32 %v1435, %v1435
        %v1438 = vmul.f32 %v1436, %v1436
        %v1439 = vsel %vm507, %v1437, 0.0
        %1440 = vadd.xlane.f32.xlu0 %v1439
        %v1441 = vpop.xlane.xlu0 %1440
        %v1442 = vsel %vm507, %v1438, 0.0
        %1443 = vadd.xlane.f32.xlu0 %v1442
        %v1444 = vpop.xlane.xlu0 %1443
        %v1445 = vmul.f32 %v1441, %v1432
        %v1446 = vmul.f32 %v1444, %v1432
        %v1447 = vadd.f32 %v1445, 1e-05
        %v1448 = vadd.f32 %v1446, 1e-05
        %v1449 = vrsqrt.pop %v1447
        %v1450 = vrsqrt.pop %v1448
        %v1451 = vmul.f32 %v1435, %v1449
        %v1452 = vmul.f32 %v1436, %v1450
        %v1453 = vld [vmem:[%s422] sm:$0x1]
        %v1455 = vlaneseq
        %v1456 = vshrl.u32 %v1455, 7
        %v1457 = vsub.s32 0, %v1456
        %v1458 = vrot.slane %v1453, %v1457
        %v1460 = vmul.f32 %v1451, %v1458
        %v1461 = vmul.f32 %v1452, %v1458
        %v1462 = vld [vmem:[%s430] sm:$0x1]
        %v1464 = vlaneseq
        %v1465 = vshrl.u32 %v1464, 7
        %v1466 = vsub.s32 0, %v1465
        %v1467 = vrot.slane %v1462, %v1466
        %v1469 = vadd.f32 %v1460, %v1467
        %v1470 = vadd.f32 %v1461, %v1467
        %1471 = vst.msk [vmem:[#allocation2] sm:$0xff] %vm507, %v1469
        %1472 = vst.msk [vmem:[#allocation2 + $0x8] sm:$0xff] %vm507, %v1470
        %p1473 = scmp.eq.s32.totalorder %s29, 5
        // Predicated region
        $region81: #{transformer_model.1} parent=55 // pred_check
          %p1474 = pneg %p1473
        $region82: #{transformer_model.1} parent=55 // pred_check_branch
          %1476 = sbr.rel (%p1474) target = $region84
        $region83: #{transformer_model.1} parent=55 // pred_region
          %v1477 = vld [vmem:[%s7] sm:$0x1]
          %v1478 = vld [vmem:[#allocation3] sm:$0x1]
          %1480 = vset.pattern.permute.xlu0 0
          %1481 = vperm.xlu0 %1480, %v1478
          %v1482 = vpop.permute.xlu0 %1481
          %v1484 = vlaneseq
          %v1485 = vshrl.u32 %v1484, 7
          %v1486 = vsub.s32 0, %v1485
          %v1487 = vrot.slane %v1482, %v1486
          %v1489 = vsel %vm507, %v1477, 0
          %v1492 = vsel %vm507, %v1469, 0
          %v1495 = vsel %vm507, %v1470, 0
          %1497 = vmatprep.subr.mxu0 0.0
          %1498 = vmatpush1.xpose.msra.mxu0 %v1492
          %1499 = vmatprep.subr.mxu0 0.0
          %1500 = vmatpush1.xpose.msra.mxu0 %v1495
          %1501 = vmatprep.subr.mxu0 0.0
          %1502 = vmatpush1.xpose.msra.mxu0 0.0
          %1503 = vmatprep.subr.mxu0 0.0
          %1504 = vmatpush1.xpose.msra.mxu0 0.0
          %1505 = vmatprep.subr.mxu0 0.0
          %1506 = vmatpush1.xpose.msra.mxu0 0.0
          %1507 = vmatprep.subr.mxu0 0.0
          %1508 = vmatpush1.xpose.msra.mxu0 0.0
          %1509 = vmatprep.subr.mxu0 0.0
          %1510 = vmatpush1.xpose.msra.mxu0 0.0
          %1511 = vmatprep.subr.mxu0 0.0
          %1512 = vmatpush1.xpose.msra.mxu0 0.0
          %1513 = vmatprep.subr.mxu0 0.0
          %1514 = vmatpush1.xpose.msra.mxu0 0.0
          %1515 = vmatprep.subr.mxu0 0.0
          %1516 = vmatpush1.xpose.msra.mxu0 0.0
          %1517 = vmatprep.subr.mxu0 0.0
          %1518 = vmatpush1.xpose.msra.mxu0 0.0
          %1519 = vmatprep.subr.mxu0 0.0
          %1520 = vmatpush1.xpose.msra.mxu0 0.0
          %1521 = vmatprep.subr.mxu0 0.0
          %1522 = vmatpush1.xpose.msra.mxu0 0.0
          %1523 = vmatprep.subr.mxu0 0.0
          %1524 = vmatpush1.xpose.msra.mxu0 0.0
          %1525 = vmatprep.subr.mxu0 0.0
          %1526 = vmatpush1.xpose.msra.mxu0 0.0
          %1527 = vmatprep.subr.mxu0 0.0
          %1528 = vmatpush1.xpose.msra.mxu0 0.0
          %1529 = vmatprep.subr.mxu0 0.0
          %1530 = vmatpush1.xpose.msra.mxu0 0.0
          %1531 = vmatprep.subr.mxu0 0.0
          %1532 = vmatpush1.xpose.msra.mxu0 0.0
          %1533 = vmatprep.subr.mxu0 0.0
          %1534 = vmatpush1.xpose.msra.mxu0 0.0
          %1535 = vmatprep.subr.mxu0 0.0
          %1536 = vmatpush1.xpose.msra.mxu0 0.0
          %1537 = vmatprep.subr.mxu0 0.0
          %1538 = vmatpush1.xpose.msra.mxu0 0.0
          %1539 = vmatprep.subr.mxu0 0.0
          %1540 = vmatpush1.xpose.msra.mxu0 0.0
          %1541 = vmatprep.subr.mxu0 0.0
          %1542 = vmatpush1.xpose.msra.mxu0 0.0
          %1543 = vmatprep.subr.mxu0 0.0
          %1544 = vmatpush1.xpose.msra.mxu0 0.0
          %1545 = vmatprep.subr.mxu0 0.0
          %1546 = vmatpush1.xpose.msra.mxu0 0.0
          %1547 = vmatprep.subr.mxu0 0.0
          %1548 = vmatpush1.xpose.msra.mxu0 0.0
          %1549 = vmatprep.subr.mxu0 0.0
          %1550 = vmatpush1.xpose.msra.mxu0 0.0
          %1551 = vmatprep.subr.mxu0 0.0
          %1552 = vmatpush1.xpose.msra.mxu0 0.0
          %1553 = vmatprep.subr.mxu0 0.0
          %1554 = vmatpush1.xpose.msra.mxu0 0.0
          %1555 = vmatprep.subr.mxu0 0.0
          %1556 = vmatpush1.xpose.msra.mxu0 0.0
          %1557 = vmatprep.subr.mxu0 0.0
          %1558 = vmatpush1.xpose.msra.mxu0 0.0
          %1559 = vmatprep.subr.mxu0 0.0
          %1560 = vmatpush1.xpose.msra.mxu0 0.0
          %1561 = vmatprep.mubr.f32.mxu0 0.0
          %1562 = vmatmul.mubr.f32.gmra.mrb[0].mxu0 %v1489
          %v1563 = vpop.f32.mrb[0].mxu0
          %v1564 = vadd.f32 %v1487, %v1563
          %v1565 = vpop.f32.mrb[0].mxu0
          %1566 = vdwg.mxu0
          %vm1567 = vcmask 122880
          %1568 = vst.msk [vmem:[%s9] sm:$0x1] %vm1567, %v1564
        $region84: #{transformer_model.1} parent=55 // pred_fallthru
          _
        // Predicated region
        $region85: #{transformer_model.1} parent=55 // pred_check
          %p1569 = pneg %p261
        $region86: #{transformer_model.1} parent=55 // pred_check_branch
          %1571 = sbr.rel (%p1569) target = $region88
        $region87: #{transformer_model.1} parent=55 // pred_region
          _
        $region88: #{transformer_model.1} parent=55 // pred_fallthru
          _
        // Predicated region
        $region89: #{transformer_model.1} parent=55 // pred_check
          %p1572 = pneg %p261
        $region90: #{transformer_model.1} parent=55 // pred_check_branch
          %1574 = sbr.rel (%p1572) target = $region92
        $region91: #{transformer_model.1} parent=55 // pred_region
          _
        $region92: #{transformer_model.1} parent=55 // pred_fallthru
          _
      $region56: #{transformer_model.1} parent=5 // pred_fallthru
        _
      %p1575 = scmp.le.s32.totalorder 2, %s24
      // Predicated region
      $region93: #{transformer_model.1} parent=5 // pred_check
        %p1576 = pneg %p1575
      $region94: #{transformer_model.1} parent=5 // pred_check_branch
        %1578 = sbr.rel (%p1576) target = $region96
      $region95: #{transformer_model.1} parent=5 // pred_region
        %s1579 = ssub.s32 %s24, 2
      $region96: #{transformer_model.1} parent=5 // pred_fallthru
        _
    $region6: #{transformer_model.1} parent=1 // loop_footer
      %s28 = sadd.s32 1, %s24
    $region7: #{transformer_model.1} parent=1 // loop_footer_branch
      %23 = sbr.rel target = $region3
    $region8: #{transformer_model.1} parent=1 // loop_exit
      _
    %1580 = vsyncpa [#allocation5], 1
    %s1581 = scalar_lea.sflag [#allocation5], 1
    %1582 = vsyncpa %s1581, 1
    %1583 = vsyncpa [#allocation7], 1
    %s1584 = scalar_lea.sflag [#allocation7], 1
    %1585 = vsyncpa %s1584, 1
    %1586 = vsyncpa [#allocation10], 1
    %s1587 = scalar_lea.sflag [#allocation10], 1
    %1588 = vsyncpa %s1587, 1

</llo_original>
